<compile_context>
chip_gen: v7x
topology: tpu7x:2x2x1
jax: 0.10.0
libtpu: 0.0.40
codegen_flags: <defaults>
</compile_context>

<pallas_src>
import jax
import jax.numpy as jnp
from jax.experimental import pallas as pl
from jax.experimental.pallas import tpu as pltpu

LEAKY_SLOPE = 0.2
BN_EPS = 1e-5


# ---------------------------------------------------------------------------
# Pallas kernels
# ---------------------------------------------------------------------------
def _conv_fused_kernel(x_ref, wa_ref, ba_ref, wb_ref, bb_ref, oa_ref, ob_ref):
    # x_ref : (tile, 9*Cin) bf16 pooled taps      (batch dim squeezed via None)
    # wa/wb : (9*Cin, Cout) bf16, ba/bb: (1, Cout) f32
    # oa/ob : (tile, Cout) f32   -- residual-branch conv / main-branch conv
    x = x_ref[...]
    oa_ref[...] = jnp.dot(x, wa_ref[...], preferred_element_type=jnp.float32) + ba_ref[...]
    ob_ref[...] = jnp.dot(x, wb_ref[...], preferred_element_type=jnp.float32) + bb_ref[...]


def _conv_kernel(x_ref, w_ref, b_ref, o_ref):
    # Plain 3x3 conv as one matmul on im2col taps: (tile, 9*C) @ (9*C, Cout).
    o_ref[...] = (jnp.dot(x_ref[...], w_ref[...], preferred_element_type=jnp.float32)
                  + b_ref[...])


def _stats_kernel(x_ref, sum_ref, sq_ref):
    # Per-channel sum / sum-of-squares accumulated over the row grid.
    @pl.when(pl.program_id(0) == 0)
    def _():
        sum_ref[...] = jnp.zeros_like(sum_ref)
        sq_ref[...] = jnp.zeros_like(sq_ref)

    x = x_ref[...]
    sum_ref[...] += jnp.sum(x, axis=0, keepdims=True)
    sq_ref[...] += jnp.sum(x * x, axis=0, keepdims=True)


def _bn_act_kernel(x_ref, a_ref, b_ref, o_ref):
    # y = leaky_relu(x * a + b) ; a,b are the folded BN scale/shift.
    y = x_ref[...] * a_ref[...] + b_ref[...]
    o_ref[...] = jnp.where(y > 0, y, LEAKY_SLOPE * y).astype(o_ref.dtype)


def _bn_add_act_kernel(x_ref, a_ref, b_ref, r_ref, ar_ref, br_ref, o_ref):
    # y = leaky_relu(BN2(h2) + BN_res(res)), both BNs folded to scale/shift.
    y = (x_ref[...] * a_ref[...] + b_ref[...]
         + r_ref[...] * ar_ref[...] + br_ref[...])
    o_ref[...] = jnp.where(y > 0, y, LEAKY_SLOPE * y).astype(o_ref.dtype)


# ---------------------------------------------------------------------------
# Tiling helper
# ---------------------------------------------------------------------------
def _pick_row_tile(rows, cap):
    """Largest row tile <= cap that divides `rows` and is a multiple of 8,
    falling back to the full extent (cap is always a multiple of 8)."""
    if rows <= cap:
        return rows
    for t in range(cap, 0, -8):
        if rows % t == 0:
            return t
    return rows


# ---------------------------------------------------------------------------
# pallas_call wrappers
# ---------------------------------------------------------------------------
def _conv_fused_call(taps, w_a, b_a, w_b, b_b):
    n, rows, k = taps.shape
    c = w_a.shape[1]
    tile = _pick_row_tile(rows, 512)
    out_sd = jax.ShapeDtypeStruct((n, rows, c), jnp.float32)
    return pl.pallas_call(
        _conv_fused_kernel,
        out_shape=(out_sd, out_sd),
        grid=(n, rows // tile),
        in_specs=[
            pl.BlockSpec((None, tile, k), lambda ni, ti: (ni, ti, 0)),
            pl.BlockSpec((k, c), lambda ni, ti: (0, 0)),
            pl.BlockSpec((1, c), lambda ni, ti: (0, 0)),
            pl.BlockSpec((k, c), lambda ni, ti: (0, 0)),
            pl.BlockSpec((1, c), lambda ni, ti: (0, 0)),
        ],
        out_specs=(
            pl.BlockSpec((None, tile, c), lambda ni, ti: (ni, ti, 0)),
            pl.BlockSpec((None, tile, c), lambda ni, ti: (ni, ti, 0)),
        ),
        compiler_params=pltpu.CompilerParams(
            dimension_semantics=("parallel", "parallel")),
    )(taps, w_a, b_a, w_b, b_b)


def _conv_call(taps, w, b):
    n, rows, k = taps.shape
    c = w.shape[1]
    tile = _pick_row_tile(rows, 512)
    return pl.pallas_call(
        _conv_kernel,
        out_shape=jax.ShapeDtypeStruct((n, rows, c), jnp.float32),
        grid=(n, rows // tile),
        in_specs=[
            pl.BlockSpec((None, tile, k), lambda ni, ti: (ni, ti, 0)),
            pl.BlockSpec((k, c), lambda ni, ti: (0, 0)),
            pl.BlockSpec((1, c), lambda ni, ti: (0, 0)),
        ],
        out_specs=pl.BlockSpec((None, tile, c), lambda ni, ti: (ni, ti, 0)),
        compiler_params=pltpu.CompilerParams(
            dimension_semantics=("parallel", "parallel")),
    )(taps, w, b)


def _bn_stats_call(x2d):
    r, c = x2d.shape
    tile = _pick_row_tile(r, 1024)
    out_sd = jax.ShapeDtypeStruct((1, c), jnp.float32)
    return pl.pallas_call(
        _stats_kernel,
        out_shape=(out_sd, out_sd),
        grid=(r // tile,),
        in_specs=[pl.BlockSpec((tile, c), lambda i: (i, 0))],
        out_specs=(pl.BlockSpec((1, c), lambda i: (0, 0)),
                   pl.BlockSpec((1, c), lambda i: (0, 0))),
        compiler_params=pltpu.CompilerParams(dimension_semantics=("arbitrary",)),
    )(x2d)


def _bn_act_call(x2d, a, b, out_dtype):
    r, c = x2d.shape
    tile = _pick_row_tile(r, 1024)
    return pl.pallas_call(
        _bn_act_kernel,
        out_shape=jax.ShapeDtypeStruct((r, c), out_dtype),
        grid=(r // tile,),
        in_specs=[
            pl.BlockSpec((tile, c), lambda i: (i, 0)),
            pl.BlockSpec((1, c), lambda i: (0, 0)),
            pl.BlockSpec((1, c), lambda i: (0, 0)),
        ],
        out_specs=pl.BlockSpec((tile, c), lambda i: (i, 0)),
        compiler_params=pltpu.CompilerParams(dimension_semantics=("parallel",)),
    )(x2d, a, b)


def _bn_add_act_call(x2d, a, b, r2d, ar, br):
    r, c = x2d.shape
    tile = _pick_row_tile(r, 1024)
    return pl.pallas_call(
        _bn_add_act_kernel,
        out_shape=jax.ShapeDtypeStruct((r, c), jnp.float32),
        grid=(r // tile,),
        in_specs=[
            pl.BlockSpec((tile, c), lambda i: (i, 0)),
            pl.BlockSpec((1, c), lambda i: (0, 0)),
            pl.BlockSpec((1, c), lambda i: (0, 0)),
            pl.BlockSpec((tile, c), lambda i: (i, 0)),
            pl.BlockSpec((1, c), lambda i: (0, 0)),
            pl.BlockSpec((1, c), lambda i: (0, 0)),
        ],
        out_specs=pl.BlockSpec((tile, c), lambda i: (i, 0)),
        compiler_params=pltpu.CompilerParams(dimension_semantics=("parallel",)),
    )(x2d, a, b, r2d, ar, br)


# ---------------------------------------------------------------------------
# Plain-JAX glue (im2col tap construction, BN scale/shift folding)
# ---------------------------------------------------------------------------
def _pooled_taps3x3(x):
    # x: (N, H, W, C) f32, zero padding 1.
    # Returns (N, (H//2)*(W//2), 9*C): the 2x2-average of each of the 9 shifted
    # tap images (avg-pool commutes with the linear conv; bias is invariant).
    n, h, w, c = x.shape
    ho, wo = h // 2, w // 2
    xp = jnp.pad(x, ((0, 0), (1, 1), (1, 1), (0, 0)))
    cols = []
    for dy in range(3):
        for dx in range(3):
            t = xp[:, dy:dy + h, dx:dx + w, :]
            t = t.reshape(n, ho, 2, wo, 2, c).mean(axis=(2, 4))
            cols.append(t)
    return jnp.concatenate(cols, axis=-1).reshape(n, ho * wo, 9 * c)


def _taps3x3(x):
    # x: (N, H, W, C) -> (N, H*W, 9*C) im2col taps, zero padding 1.
    n, h, w, c = x.shape
    xp = jnp.pad(x, ((0, 0), (1, 1), (1, 1), (0, 0)))
    cols = [xp[:, dy:dy + h, dx:dx + w, :] for dy in range(3) for dx in range(3)]
    return jnp.concatenate(cols, axis=-1).reshape(n, h * w, 9 * c)


def _bn_scale_shift(s, q, count, gamma, beta):
    # Fold training-mode BN (biased batch variance) into y = x * a + b.
    mu = s / float(count)
    var = jnp.maximum(q / float(count) - mu * mu, 0.0)
    a = gamma.astype(jnp.float32) * jax.lax.rsqrt(var + BN_EPS)
    b = beta.astype(jnp.float32) - mu * a
    return a.reshape(1, -1), b.reshape(1, -1)


# ---------------------------------------------------------------------------
# ResBlock forward
# ---------------------------------------------------------------------------
def resblock_forward(x_nchw, params):
    n, cin, h, w = x_nchw.shape
    assert h % 2 == 0 and w % 2 == 0, \
        "bilinear 0.5x (align_corners=False) == 2x2 avg pool only for even H, W"
    cout = params["g1"].shape[0]
    ho, wo = h // 2, w // 2
    rows = ho * wo

    x = jnp.transpose(x_nchw, (0, 2, 3, 1)).astype(jnp.float32)   # NCHW -> NHWC

    # --- fused conv1: residual conv + first main-branch conv + 2x2 avg pool ---
    ptaps = _pooled_taps3x3(x).astype(jnp.bfloat16)               # (N, rows, 9*Cin)
    w_res = params["w_res"].reshape(9 * cin, cout).astype(jnp.bfloat16)
    w1 = params["w1"].reshape(9 * cin, cout).astype(jnp.bfloat16)
    b_res = params["b_res"].reshape(1, cout).astype(jnp.float32)
    b1 = params["b1"].reshape(1, cout).astype(jnp.float32)
    res_pre, h1_pre = _conv_fused_call(ptaps, w_res, b_res, w1, b1)  # f32 each

    # --- BN1 (batch stats) + LeakyReLU(0.2) on the main branch ---
    h1_2d = h1_pre.reshape(n * rows, cout)
    s1, q1 = _bn_stats_call(h1_2d)
    a1, sh1 = _bn_scale_shift(s1, q1, n * rows, params["g1"], params["beta1"])
    h1_act = _bn_act_call(h1_2d, a1, sh1, jnp.bfloat16)           # bf16 for conv2

    # --- second conv (half resolution, no pooling) ---
    taps2 = _taps3x3(h1_act.reshape(n, ho, wo, cout))             # (N, rows, 9*Cout) bf16
    w2 = params["w2"].reshape(9 * cout, cout).astype(jnp.bfloat16)
    b2 = params["b2"].reshape(1, cout).astype(jnp.float32)
    h2_pre = _conv_call(taps2, w2, b2)                            # (N, rows, Cout) f32

    # --- final: LeakyReLU( BN2(h2) + BN_res(res) ), both BNs folded ---
    h2_2d = h2_pre.reshape(n * rows, cout)
    res_2d = res_pre.reshape(n * rows, cout)
    s2, q2 = _bn_stats_call(h2_2d)
    a2, sh2 = _bn_scale_shift(s2, q2, n * rows, params["g2"], params["beta2"])
    sr, qr = _bn_stats_call(res_2d)
    ar, shr = _bn_scale_shift(sr, qr, n * rows, params["g_res"], params["beta_res"])
    out = _bn_add_act_call(h2_2d, a2, sh2, res_2d, ar, shr)       # (N*rows, Cout) f32

    out = out.reshape(n, ho, wo, cout)
    return jnp.transpose(out, (0, 3, 1, 2))                       # NHWC -> NCHW


def init_params(key, cin, cout):
    # Deterministic synthetic parameters (shapes match nn.Conv2d / nn.BatchNorm2d).
    ks = jax.random.split(key, 6)

    def conv_w(k, ci, co):
        # tap-major conv weight: (9, Cin, Cout)  <->  torch (Cout, Cin, 3, 3)
        return jax.random.normal(k, (9, ci, co), jnp.float32) * 0.1

    return dict(
        w_res=conv_w(ks[0], cin, cout),
        b_res=jax.random.normal(ks[1], (cout,), jnp.float32) * 0.1,
        g_res=jnp.ones((cout,), jnp.float32), beta_res=jnp.zeros((cout,), jnp.float32),
        w1=conv_w(ks[2], cin, cout),
        b1=jax.random.normal(ks[3], (cout,), jnp.float32) * 0.1,
        g1=jnp.ones((cout,), jnp.float32), beta1=jnp.zeros((cout,), jnp.float32),
        w2=conv_w(ks[4], cout, cout),
        b2=jax.random.normal(ks[5], (cout,), jnp.float32) * 0.1,
        g2=jnp.ones((cout,), jnp.float32), beta2=jnp.zeros((cout,), jnp.float32),
    )


if __name__ == "__main__":
    key = jax.random.PRNGKey(0)
    kx, kp = jax.random.split(key)
    N, CIN, COUT, H, W = 2, 4, 8, 16, 16
    x = jax.random.normal(kx, (N, CIN, H, W), jnp.float32)
    params = init_params(kp, CIN, COUT)

    fwd = jax.jit(resblock_forward)
    out = jax.block_until_ready(fwd(x, params))
    assert out.shape == (N, COUT, H // 2, W // 2), out.shape
    assert bool(jnp.all(jnp.isfinite(out)))
    print("KERNEL_OK")
</pallas_src>

<mosaic_0001>
module attributes {stable_mosaic.version = 11 : i64} {
  func.func @_conv_fused_kernel(%arg0: i32, %arg1: i32, %arg2: memref<1x64x36xbf16, #tpu.memory_space<vmem>>, %arg3: memref<36x8xbf16, #tpu.memory_space<vmem>>, %arg4: memref<1x8xf32, #tpu.memory_space<vmem>>, %arg5: memref<36x8xbf16, #tpu.memory_space<vmem>>, %arg6: memref<1x8xf32, #tpu.memory_space<vmem>>, %arg7: memref<1x64x8xf32, #tpu.memory_space<vmem>>, %arg8: memref<1x64x8xf32, #tpu.memory_space<vmem>>) attributes {dimension_semantics = [#tpu.dimension_semantics<parallel>, #tpu.dimension_semantics<parallel>], iteration_bounds = array<i64: 2, 1>, scalar_prefetch = 0 : i64, scratch_operands = 0 : i64, tpu.core_type = #tpu.core_type<tc>, window_params = [{transform_indices = @transform_0, window_bounds = array<i64: 1, 64, 36>}, {pipeline_mode = #tpu.pipeline_mode<synchronous>, transform_indices = @transform_1, window_bounds = array<i64: 36, 8>}, {pipeline_mode = #tpu.pipeline_mode<synchronous>, transform_indices = @transform_2, window_bounds = array<i64: 1, 8>}, {pipeline_mode = #tpu.pipeline_mode<synchronous>, transform_indices = @transform_3, window_bounds = array<i64: 36, 8>}, {pipeline_mode = #tpu.pipeline_mode<synchronous>, transform_indices = @transform_4, window_bounds = array<i64: 1, 8>}, {transform_indices = @transform_5, window_bounds = array<i64: 1, 64, 8>}, {transform_indices = @transform_6, window_bounds = array<i64: 1, 64, 8>}]} {
    %c0 = arith.constant 0 : index
    %c0_0 = arith.constant 0 : index
    %c0_1 = arith.constant 0 : index
    %0 = vector.load %arg2[%c0, %c0_0, %c0_1] : memref<1x64x36xbf16, #tpu.memory_space<vmem>>, vector<1x64x36xbf16>
    %1 = vector.shape_cast %0 : vector<1x64x36xbf16> to vector<64x36xbf16>
    %c0_2 = arith.constant 0 : index
    %c0_3 = arith.constant 0 : index
    %2 = vector.load %arg3[%c0_2, %c0_3] : memref<36x8xbf16, #tpu.memory_space<vmem>>, vector<36x8xbf16>
    %cst = arith.constant dense<0.000000e+00> : vector<64x8xf32>
    %3 = tpu.matmul %1, %2, %cst {dimension_numbers = #tpu.dot_dimension_numbers<[1], [0], [0], [1], [0, 0, 1, 1], [], []>} : vector<64x36xbf16>, vector<36x8xbf16>, vector<64x8xf32> -> vector<64x8xf32>
    %c0_4 = arith.constant 0 : index
    %c0_5 = arith.constant 0 : index
    %4 = vector.load %arg4[%c0_4, %c0_5] : memref<1x8xf32, #tpu.memory_space<vmem>>, vector<1x8xf32>
    %5 = vector.broadcast %4 : vector<1x8xf32> to vector<64x8xf32>
    %6 = arith.addf %3, %5 : vector<64x8xf32>
    %c0_6 = arith.constant 0 : index
    %c0_7 = arith.constant 0 : index
    %c0_8 = arith.constant 0 : index
    %7 = vector.load %arg7[%c0_6, %c0_7, %c0_8] : memref<1x64x8xf32, #tpu.memory_space<vmem>>, vector<1x64x8xf32>
    %8 = vector.shape_cast %7 : vector<1x64x8xf32> to vector<64x8xf32>
    %9 = vector.shape_cast %6 : vector<64x8xf32> to vector<1x64x8xf32>
    tpu.vector_store %arg7[%c0_6, %c0_7, %c0_8], %9 {strides = array<i32>} : memref<1x64x8xf32, #tpu.memory_space<vmem>>, vector<1x64x8xf32>,
    %c0_9 = arith.constant 0 : index
    %c0_10 = arith.constant 0 : index
    %10 = vector.load %arg5[%c0_9, %c0_10] : memref<36x8xbf16, #tpu.memory_space<vmem>>, vector<36x8xbf16>
    %cst_11 = arith.constant dense<0.000000e+00> : vector<64x8xf32>
    %11 = tpu.matmul %1, %10, %cst_11 {dimension_numbers = #tpu.dot_dimension_numbers<[1], [0], [0], [1], [0, 0, 1, 1], [], []>} : vector<64x36xbf16>, vector<36x8xbf16>, vector<64x8xf32> -> vector<64x8xf32>
    %c0_12 = arith.constant 0 : index
    %c0_13 = arith.constant 0 : index
    %12 = vector.load %arg6[%c0_12, %c0_13] : memref<1x8xf32, #tpu.memory_space<vmem>>, vector<1x8xf32>
    %13 = vector.broadcast %12 : vector<1x8xf32> to vector<64x8xf32>
    %14 = arith.addf %11, %13 : vector<64x8xf32>
    %c0_14 = arith.constant 0 : index
    %c0_15 = arith.constant 0 : index
    %c0_16 = arith.constant 0 : index
    %15 = vector.load %arg8[%c0_14, %c0_15, %c0_16] : memref<1x64x8xf32, #tpu.memory_space<vmem>>, vector<1x64x8xf32>
    %16 = vector.shape_cast %15 : vector<1x64x8xf32> to vector<64x8xf32>
    %17 = vector.shape_cast %14 : vector<64x8xf32> to vector<1x64x8xf32>
    tpu.vector_store %arg8[%c0_14, %c0_15, %c0_16], %17 {strides = array<i32>} : memref<1x64x8xf32, #tpu.memory_space<vmem>>, vector<1x64x8xf32>,
    return
  }
  func.func @transform_0(%arg0: i32, %arg1: i32) -> (i32, i32, i32) {
    %c0_i32 = arith.constant 0 : i32
    %c0_i32_0 = arith.constant 0 : i32
    return %arg0, %arg1, %c0_i32 : i32, i32, i32
  }
  func.func @transform_1(%arg0: i32, %arg1: i32) -> (i32, i32) {
    %c0_i32 = arith.constant 0 : i32
    %c0_i32_0 = arith.constant 0 : i32
    %c0_i32_1 = arith.constant 0 : i32
    return %c0_i32, %c0_i32_0 : i32, i32
  }
  func.func @transform_2(%arg0: i32, %arg1: i32) -> (i32, i32) {
    %c0_i32 = arith.constant 0 : i32
    %c0_i32_0 = arith.constant 0 : i32
    %c0_i32_1 = arith.constant 0 : i32
    return %c0_i32, %c0_i32_0 : i32, i32
  }
  func.func @transform_3(%arg0: i32, %arg1: i32) -> (i32, i32) {
    %c0_i32 = arith.constant 0 : i32
    %c0_i32_0 = arith.constant 0 : i32
    %c0_i32_1 = arith.constant 0 : i32
    return %c0_i32, %c0_i32_0 : i32, i32
  }
  func.func @transform_4(%arg0: i32, %arg1: i32) -> (i32, i32) {
    %c0_i32 = arith.constant 0 : i32
    %c0_i32_0 = arith.constant 0 : i32
    %c0_i32_1 = arith.constant 0 : i32
    return %c0_i32, %c0_i32_0 : i32, i32
  }
  func.func @transform_5(%arg0: i32, %arg1: i32) -> (i32, i32, i32) {
    %c0_i32 = arith.constant 0 : i32
    %c0_i32_0 = arith.constant 0 : i32
    return %arg0, %arg1, %c0_i32 : i32, i32, i32
  }
  func.func @transform_6(%arg0: i32, %arg1: i32) -> (i32, i32, i32) {
    %c0_i32 = arith.constant 0 : i32
    %c0_i32_0 = arith.constant 0 : i32
    return %arg0, %arg1, %c0_i32 : i32, i32, i32
  }
}

module attributes {stable_mosaic.version = 11 : i64} {
  func.func @_stats_kernel(%arg0: i32, %arg1: memref<128x8xf32, #tpu.memory_space<vmem>>, %arg2: memref<1x8xf32, #tpu.memory_space<vmem>>, %arg3: memref<1x8xf32, #tpu.memory_space<vmem>>) attributes {dimension_semantics = [#tpu.dimension_semantics<arbitrary>], iteration_bounds = array<i64: 1>, scalar_prefetch = 0 : i64, scratch_operands = 0 : i64, tpu.core_type = #tpu.core_type<tc>, window_params = [{transform_indices = @transform_0, window_bounds = array<i64: 128, 8>}, {pipeline_mode = #tpu.pipeline_mode<synchronous>, transform_indices = @transform_1, window_bounds = array<i64: 1, 8>}, {pipeline_mode = #tpu.pipeline_mode<synchronous>, transform_indices = @transform_2, window_bounds = array<i64: 1, 8>}]} {
    %c0_i32 = arith.constant 0 : i32
    %0 = arith.cmpi eq, %arg0, %c0_i32 : i32
    %1 = arith.extui %0 : i1 to i32
    %c0_i32_0 = arith.constant 0 : i32
    %2 = arith.cmpi ne, %1, %c0_i32_0 : i32
    scf.if %2 {
      %cst_11 = arith.constant 0.000000e+00 : f32
      %15 = vector.broadcast %cst_11 : f32 to vector<1x8xf32>
      %c0_12 = arith.constant 0 : index
      %c0_13 = arith.constant 0 : index
      %16 = vector.load %arg2[%c0_12, %c0_13] : memref<1x8xf32, #tpu.memory_space<vmem>>, vector<1x8xf32>
      tpu.vector_store %arg2[%c0_12, %c0_13], %15 {strides = array<i32>} : memref<1x8xf32, #tpu.memory_space<vmem>>, vector<1x8xf32>,
      %cst_14 = arith.constant 0.000000e+00 : f32
      %17 = vector.broadcast %cst_14 : f32 to vector<1x8xf32>
      %c0_15 = arith.constant 0 : index
      %c0_16 = arith.constant 0 : index
      %18 = vector.load %arg3[%c0_15, %c0_16] : memref<1x8xf32, #tpu.memory_space<vmem>>, vector<1x8xf32>
      tpu.vector_store %arg3[%c0_15, %c0_16], %17 {strides = array<i32>} : memref<1x8xf32, #tpu.memory_space<vmem>>, vector<1x8xf32>,
    } else {
    }
    %c0 = arith.constant 0 : index
    %c0_1 = arith.constant 0 : index
    %3 = vector.load %arg1[%c0, %c0_1] : memref<128x8xf32, #tpu.memory_space<vmem>>, vector<128x8xf32>
    %c0_2 = arith.constant 0 : index
    %c0_3 = arith.constant 0 : index
    %4 = vector.load %arg2[%c0_2, %c0_3] : memref<1x8xf32, #tpu.memory_space<vmem>>, vector<1x8xf32>
    %cst = arith.constant dense<0.000000e+00> : vector<8xf32>
    %5 = vector.multi_reduction <add>, %3, %cst [0] : vector<128x8xf32> to vector<8xf32>
    %6 = vector.shape_cast %5 : vector<8xf32> to vector<1x8xf32>
    %7 = arith.addf %4, %6 : vector<1x8xf32>
    %c0_4 = arith.constant 0 : index
    %c0_5 = arith.constant 0 : index
    %8 = vector.load %arg2[%c0_4, %c0_5] : memref<1x8xf32, #tpu.memory_space<vmem>>, vector<1x8xf32>
    tpu.vector_store %arg2[%c0_4, %c0_5], %7 {strides = array<i32>} : memref<1x8xf32, #tpu.memory_space<vmem>>, vector<1x8xf32>,
    %c0_6 = arith.constant 0 : index
    %c0_7 = arith.constant 0 : index
    %9 = vector.load %arg3[%c0_6, %c0_7] : memref<1x8xf32, #tpu.memory_space<vmem>>, vector<1x8xf32>
    %10 = arith.mulf %3, %3 : vector<128x8xf32>
    %cst_8 = arith.constant dense<0.000000e+00> : vector<8xf32>
    %11 = vector.multi_reduction <add>, %10, %cst_8 [0] : vector<128x8xf32> to vector<8xf32>
    %12 = vector.shape_cast %11 : vector<8xf32> to vector<1x8xf32>
    %13 = arith.addf %9, %12 : vector<1x8xf32>
    %c0_9 = arith.constant 0 : index
    %c0_10 = arith.constant 0 : index
    %14 = vector.load %arg3[%c0_9, %c0_10] : memref<1x8xf32, #tpu.memory_space<vmem>>, vector<1x8xf32>
    tpu.vector_store %arg3[%c0_9, %c0_10], %13 {strides = array<i32>} : memref<1x8xf32, #tpu.memory_space<vmem>>, vector<1x8xf32>,
    return
  }
  func.func @transform_0(%arg0: i32) -> (i32, i32) {
    %c0_i32 = arith.constant 0 : i32
    %c0_i32_0 = arith.constant 0 : i32
    return %arg0, %c0_i32 : i32, i32
  }
  func.func @transform_1(%arg0: i32) -> (i32, i32) {
    %c0_i32 = arith.constant 0 : i32
    %c0_i32_0 = arith.constant 0 : i32
    %c0_i32_1 = arith.constant 0 : i32
    return %c0_i32, %c0_i32_0 : i32, i32
  }
  func.func @transform_2(%arg0: i32) -> (i32, i32) {
    %c0_i32 = arith.constant 0 : i32
    %c0_i32_0 = arith.constant 0 : i32
    %c0_i32_1 = arith.constant 0 : i32
    return %c0_i32, %c0_i32_0 : i32, i32
  }
}

module attributes {stable_mosaic.version = 11 : i64} {
  func.func @_bn_act_kernel(%arg0: i32, %arg1: memref<128x8xf32, #tpu.memory_space<vmem>>, %arg2: memref<1x8xf32, #tpu.memory_space<vmem>>, %arg3: memref<1x8xf32, #tpu.memory_space<vmem>>, %arg4: memref<128x8xbf16, #tpu.memory_space<vmem>>) attributes {dimension_semantics = [#tpu.dimension_semantics<parallel>], iteration_bounds = array<i64: 1>, scalar_prefetch = 0 : i64, scratch_operands = 0 : i64, tpu.core_type = #tpu.core_type<tc>, window_params = [{transform_indices = @transform_0, window_bounds = array<i64: 128, 8>}, {pipeline_mode = #tpu.pipeline_mode<synchronous>, transform_indices = @transform_1, window_bounds = array<i64: 1, 8>}, {pipeline_mode = #tpu.pipeline_mode<synchronous>, transform_indices = @transform_2, window_bounds = array<i64: 1, 8>}, {transform_indices = @transform_3, window_bounds = array<i64: 128, 8>}]} {
    %c0 = arith.constant 0 : index
    %c0_0 = arith.constant 0 : index
    %0 = vector.load %arg1[%c0, %c0_0] : memref<128x8xf32, #tpu.memory_space<vmem>>, vector<128x8xf32>
    %c0_1 = arith.constant 0 : index
    %c0_2 = arith.constant 0 : index
    %1 = vector.load %arg2[%c0_1, %c0_2] : memref<1x8xf32, #tpu.memory_space<vmem>>, vector<1x8xf32>
    %2 = vector.broadcast %1 : vector<1x8xf32> to vector<128x8xf32>
    %3 = arith.mulf %0, %2 : vector<128x8xf32>
    %c0_3 = arith.constant 0 : index
    %c0_4 = arith.constant 0 : index
    %4 = vector.load %arg3[%c0_3, %c0_4] : memref<1x8xf32, #tpu.memory_space<vmem>>, vector<1x8xf32>
    %5 = vector.broadcast %4 : vector<1x8xf32> to vector<128x8xf32>
    %6 = arith.addf %3, %5 : vector<128x8xf32>
    %cst = arith.constant 0.000000e+00 : f32
    %7 = vector.broadcast %cst : f32 to vector<128x8xf32>
    %8 = arith.cmpf ogt, %6, %7 : vector<128x8xf32>
    %cst_5 = arith.constant 2.000000e-01 : f32
    %9 = vector.broadcast %cst_5 : f32 to vector<128x8xf32>
    %10 = arith.mulf %9, %6 : vector<128x8xf32>
    %11 = arith.select %8, %6, %10 : vector<128x8xi1>, vector<128x8xf32>
    %12 = arith.truncf %11 : vector<128x8xf32> to vector<128x8xbf16>
    %c0_6 = arith.constant 0 : index
    %c0_7 = arith.constant 0 : index
    %13 = vector.load %arg4[%c0_6, %c0_7] : memref<128x8xbf16, #tpu.memory_space<vmem>>, vector<128x8xbf16>
    tpu.vector_store %arg4[%c0_6, %c0_7], %12 {strides = array<i32>} : memref<128x8xbf16, #tpu.memory_space<vmem>>, vector<128x8xbf16>,
    return
  }
  func.func @transform_0(%arg0: i32) -> (i32, i32) {
    %c0_i32 = arith.constant 0 : i32
    %c0_i32_0 = arith.constant 0 : i32
    return %arg0, %c0_i32 : i32, i32
  }
  func.func @transform_1(%arg0: i32) -> (i32, i32) {
    %c0_i32 = arith.constant 0 : i32
    %c0_i32_0 = arith.constant 0 : i32
    %c0_i32_1 = arith.constant 0 : i32
    return %c0_i32, %c0_i32_0 : i32, i32
  }
  func.func @transform_2(%arg0: i32) -> (i32, i32) {
    %c0_i32 = arith.constant 0 : i32
    %c0_i32_0 = arith.constant 0 : i32
    %c0_i32_1 = arith.constant 0 : i32
    return %c0_i32, %c0_i32_0 : i32, i32
  }
  func.func @transform_3(%arg0: i32) -> (i32, i32) {
    %c0_i32 = arith.constant 0 : i32
    %c0_i32_0 = arith.constant 0 : i32
    return %arg0, %c0_i32 : i32, i32
  }
}

module attributes {stable_mosaic.version = 11 : i64} {
  func.func @_bn_add_act_kernel(%arg0: i32, %arg1: memref<128x8xf32, #tpu.memory_space<vmem>>, %arg2: memref<1x8xf32, #tpu.memory_space<vmem>>, %arg3: memref<1x8xf32, #tpu.memory_space<vmem>>, %arg4: memref<128x8xf32, #tpu.memory_space<vmem>>, %arg5: memref<1x8xf32, #tpu.memory_space<vmem>>, %arg6: memref<1x8xf32, #tpu.memory_space<vmem>>, %arg7: memref<128x8xf32, #tpu.memory_space<vmem>>) attributes {dimension_semantics = [#tpu.dimension_semantics<parallel>], iteration_bounds = array<i64: 1>, scalar_prefetch = 0 : i64, scratch_operands = 0 : i64, tpu.core_type = #tpu.core_type<tc>, window_params = [{transform_indices = @transform_0, window_bounds = array<i64: 128, 8>}, {pipeline_mode = #tpu.pipeline_mode<synchronous>, transform_indices = @transform_1, window_bounds = array<i64: 1, 8>}, {pipeline_mode = #tpu.pipeline_mode<synchronous>, transform_indices = @transform_2, window_bounds = array<i64: 1, 8>}, {transform_indices = @transform_3, window_bounds = array<i64: 128, 8>}, {pipeline_mode = #tpu.pipeline_mode<synchronous>, transform_indices = @transform_4, window_bounds = array<i64: 1, 8>}, {pipeline_mode = #tpu.pipeline_mode<synchronous>, transform_indices = @transform_5, window_bounds = array<i64: 1, 8>}, {transform_indices = @transform_6, window_bounds = array<i64: 128, 8>}]} {
    %c0 = arith.constant 0 : index
    %c0_0 = arith.constant 0 : index
    %0 = vector.load %arg1[%c0, %c0_0] : memref<128x8xf32, #tpu.memory_space<vmem>>, vector<128x8xf32>
    %c0_1 = arith.constant 0 : index
    %c0_2 = arith.constant 0 : index
    %1 = vector.load %arg2[%c0_1, %c0_2] : memref<1x8xf32, #tpu.memory_space<vmem>>, vector<1x8xf32>
    %2 = vector.broadcast %1 : vector<1x8xf32> to vector<128x8xf32>
    %3 = arith.mulf %0, %2 : vector<128x8xf32>
    %c0_3 = arith.constant 0 : index
    %c0_4 = arith.constant 0 : index
    %4 = vector.load %arg3[%c0_3, %c0_4] : memref<1x8xf32, #tpu.memory_space<vmem>>, vector<1x8xf32>
    %5 = vector.broadcast %4 : vector<1x8xf32> to vector<128x8xf32>
    %6 = arith.addf %3, %5 : vector<128x8xf32>
    %c0_5 = arith.constant 0 : index
    %c0_6 = arith.constant 0 : index
    %7 = vector.load %arg4[%c0_5, %c0_6] : memref<128x8xf32, #tpu.memory_space<vmem>>, vector<128x8xf32>
    %c0_7 = arith.constant 0 : index
    %c0_8 = arith.constant 0 : index
    %8 = vector.load %arg5[%c0_7, %c0_8] : memref<1x8xf32, #tpu.memory_space<vmem>>, vector<1x8xf32>
    %9 = vector.broadcast %8 : vector<1x8xf32> to vector<128x8xf32>
    %10 = arith.mulf %7, %9 : vector<128x8xf32>
    %11 = arith.addf %6, %10 : vector<128x8xf32>
    %c0_9 = arith.constant 0 : index
    %c0_10 = arith.constant 0 : index
    %12 = vector.load %arg6[%c0_9, %c0_10] : memref<1x8xf32, #tpu.memory_space<vmem>>, vector<1x8xf32>
    %13 = vector.broadcast %12 : vector<1x8xf32> to vector<128x8xf32>
    %14 = arith.addf %11, %13 : vector<128x8xf32>
    %cst = arith.constant 0.000000e+00 : f32
    %15 = vector.broadcast %cst : f32 to vector<128x8xf32>
    %16 = arith.cmpf ogt, %14, %15 : vector<128x8xf32>
    %cst_11 = arith.constant 2.000000e-01 : f32
    %17 = vector.broadcast %cst_11 : f32 to vector<128x8xf32>
    %18 = arith.mulf %17, %14 : vector<128x8xf32>
    %19 = arith.select %16, %14, %18 : vector<128x8xi1>, vector<128x8xf32>
    %c0_12 = arith.constant 0 : index
    %c0_13 = arith.constant 0 : index
    %20 = vector.load %arg7[%c0_12, %c0_13] : memref<128x8xf32, #tpu.memory_space<vmem>>, vector<128x8xf32>
    tpu.vector_store %arg7[%c0_12, %c0_13], %19 {strides = array<i32>} : memref<128x8xf32, #tpu.memory_space<vmem>>, vector<128x8xf32>,
    return
  }
  func.func @transform_0(%arg0: i32) -> (i32, i32) {
    %c0_i32 = arith.constant 0 : i32
    %c0_i32_0 = arith.constant 0 : i32
    return %arg0, %c0_i32 : i32, i32
  }
  func.func @transform_1(%arg0: i32) -> (i32, i32) {
    %c0_i32 = arith.constant 0 : i32
    %c0_i32_0 = arith.constant 0 : i32
    %c0_i32_1 = arith.constant 0 : i32
    return %c0_i32, %c0_i32_0 : i32, i32
  }
  func.func @transform_2(%arg0: i32) -> (i32, i32) {
    %c0_i32 = arith.constant 0 : i32
    %c0_i32_0 = arith.constant 0 : i32
    %c0_i32_1 = arith.constant 0 : i32
    return %c0_i32, %c0_i32_0 : i32, i32
  }
  func.func @transform_3(%arg0: i32) -> (i32, i32) {
    %c0_i32 = arith.constant 0 : i32
    %c0_i32_0 = arith.constant 0 : i32
    return %arg0, %c0_i32 : i32, i32
  }
  func.func @transform_4(%arg0: i32) -> (i32, i32) {
    %c0_i32 = arith.constant 0 : i32
    %c0_i32_0 = arith.constant 0 : i32
    %c0_i32_1 = arith.constant 0 : i32
    return %c0_i32, %c0_i32_0 : i32, i32
  }
  func.func @transform_5(%arg0: i32) -> (i32, i32) {
    %c0_i32 = arith.constant 0 : i32
    %c0_i32_0 = arith.constant 0 : i32
    %c0_i32_1 = arith.constant 0 : i32
    return %c0_i32, %c0_i32_0 : i32, i32
  }
  func.func @transform_6(%arg0: i32) -> (i32, i32) {
    %c0_i32 = arith.constant 0 : i32
    %c0_i32_0 = arith.constant 0 : i32
    return %arg0, %c0_i32 : i32, i32
  }
}

module attributes {stable_mosaic.version = 11 : i64} {
  func.func @_conv_kernel(%arg0: i32, %arg1: i32, %arg2: memref<1x64x72xbf16, #tpu.memory_space<vmem>>, %arg3: memref<72x8xbf16, #tpu.memory_space<vmem>>, %arg4: memref<1x8xf32, #tpu.memory_space<vmem>>, %arg5: memref<1x64x8xf32, #tpu.memory_space<vmem>>) attributes {dimension_semantics = [#tpu.dimension_semantics<parallel>, #tpu.dimension_semantics<parallel>], iteration_bounds = array<i64: 2, 1>, scalar_prefetch = 0 : i64, scratch_operands = 0 : i64, tpu.core_type = #tpu.core_type<tc>, window_params = [{transform_indices = @transform_0, window_bounds = array<i64: 1, 64, 72>}, {pipeline_mode = #tpu.pipeline_mode<synchronous>, transform_indices = @transform_1, window_bounds = array<i64: 72, 8>}, {pipeline_mode = #tpu.pipeline_mode<synchronous>, transform_indices = @transform_2, window_bounds = array<i64: 1, 8>}, {transform_indices = @transform_3, window_bounds = array<i64: 1, 64, 8>}]} {
    %c0 = arith.constant 0 : index
    %c0_0 = arith.constant 0 : index
    %c0_1 = arith.constant 0 : index
    %0 = vector.load %arg2[%c0, %c0_0, %c0_1] : memref<1x64x72xbf16, #tpu.memory_space<vmem>>, vector<1x64x72xbf16>
    %1 = vector.shape_cast %0 : vector<1x64x72xbf16> to vector<64x72xbf16>
    %c0_2 = arith.constant 0 : index
    %c0_3 = arith.constant 0 : index
    %2 = vector.load %arg3[%c0_2, %c0_3] : memref<72x8xbf16, #tpu.memory_space<vmem>>, vector<72x8xbf16>
    %cst = arith.constant dense<0.000000e+00> : vector<64x8xf32>
    %3 = tpu.matmul %1, %2, %cst {dimension_numbers = #tpu.dot_dimension_numbers<[1], [0], [0], [1], [0, 0, 1, 1], [], []>} : vector<64x72xbf16>, vector<72x8xbf16>, vector<64x8xf32> -> vector<64x8xf32>
    %c0_4 = arith.constant 0 : index
    %c0_5 = arith.constant 0 : index
    %4 = vector.load %arg4[%c0_4, %c0_5] : memref<1x8xf32, #tpu.memory_space<vmem>>, vector<1x8xf32>
    %5 = vector.broadcast %4 : vector<1x8xf32> to vector<64x8xf32>
    %6 = arith.addf %3, %5 : vector<64x8xf32>
    %c0_6 = arith.constant 0 : index
    %c0_7 = arith.constant 0 : index
    %c0_8 = arith.constant 0 : index
    %7 = vector.load %arg5[%c0_6, %c0_7, %c0_8] : memref<1x64x8xf32, #tpu.memory_space<vmem>>, vector<1x64x8xf32>
    %8 = vector.shape_cast %7 : vector<1x64x8xf32> to vector<64x8xf32>
    %9 = vector.shape_cast %6 : vector<64x8xf32> to vector<1x64x8xf32>
    tpu.vector_store %arg5[%c0_6, %c0_7, %c0_8], %9 {strides = array<i32>} : memref<1x64x8xf32, #tpu.memory_space<vmem>>, vector<1x64x8xf32>,
    return
  }
  func.func @transform_0(%arg0: i32, %arg1: i32) -> (i32, i32, i32) {
    %c0_i32 = arith.constant 0 : i32
    %c0_i32_0 = arith.constant 0 : i32
    return %arg0, %arg1, %c0_i32 : i32, i32, i32
  }
  func.func @transform_1(%arg0: i32, %arg1: i32) -> (i32, i32) {
    %c0_i32 = arith.constant 0 : i32
    %c0_i32_0 = arith.constant 0 : i32
    %c0_i32_1 = arith.constant 0 : i32
    return %c0_i32, %c0_i32_0 : i32, i32
  }
  func.func @transform_2(%arg0: i32, %arg1: i32) -> (i32, i32) {
    %c0_i32 = arith.constant 0 : i32
    %c0_i32_0 = arith.constant 0 : i32
    %c0_i32_1 = arith.constant 0 : i32
    return %c0_i32, %c0_i32_0 : i32, i32
  }
  func.func @transform_3(%arg0: i32, %arg1: i32) -> (i32, i32, i32) {
    %c0_i32 = arith.constant 0 : i32
    %c0_i32_0 = arith.constant 0 : i32
    return %arg0, %arg1, %c0_i32 : i32, i32, i32
  }
}

</mosaic_0001>

<llo_original>
// kernel: resblock_forward.12
$region0: #{resblock_forward.12}
  #allocation0 [shape = 'u32[]', space=smem, size = 0x4, offset = 0x4, fixed_abs, tag = 'smem constant byte address 0x4 - core index']
  #allocation1 [shape = 'u32[144,128]{1,0:T(1,128)}', space=vmem, size = 0x12000, scoped, tag = 'internal scratch']
  %s0 = inlined_call_operand.vmem [shape: f32[128,8], index: 0, kind: input, shape index: {}]
  %s1 = inlined_call_operand.vmem [shape: f32[1,8], index: 1, kind: output, shape index: {0}]
  %s2 = inlined_call_operand.vmem [shape: f32[1,8], index: 2, kind: output, shape index: {1}]
  %3 = xla_tuple %s1, %s2
  %s4 = sld [smem:[#allocation0]]
  $region26: #{resblock_forward.12} parent=0
    _
  %s6 = ssub.s32 1, %s4
  %s7 = scalar_select 0, %s6, %s4
  // Predicated region
  $region2: #{resblock_forward.12} parent=0 // pred_check
    _
  $region3: #{resblock_forward.12} parent=0 // pred_check_branch
    %9 = sbr.rel (0) target = $region5
  $region4: #{resblock_forward.12} parent=0 // pred_region
    _
  $region5: #{resblock_forward.12} parent=0 // pred_fallthru
    _
  %p10 = scmp.eq.s32.totalorder 0, 0
  // Predicated region
  $region6: #{resblock_forward.12} parent=0 // pred_check
    %p11 = pneg %p10
  $region7: #{resblock_forward.12} parent=0 // pred_check_branch
    %13 = sbr.rel (%p11) target = $region9
  $region8: #{resblock_forward.12} parent=0 // pred_region
    %vm14 = vcmask 57344
    %15 = vst.msk [vmem:[%s1] sm:$0x1] %vm14, 0.0
    %16 = vst.msk [vmem:[%s2] sm:$0x1] %vm14, 0.0
  $region9: #{resblock_forward.12} parent=0 // pred_fallthru
    _
  %v17 = vld [vmem:[%s0] sm:$0xff]
  %v18 = vld [vmem:[%s0 + $0x8] sm:$0xff]
  %v19 = vld [vmem:[%s0 + $0x10] sm:$0xff]
  %v20 = vld [vmem:[%s0 + $0x18] sm:$0xff]
  %v21 = vld [vmem:[%s0 + $0x20] sm:$0xff]
  %v22 = vld [vmem:[%s0 + $0x28] sm:$0xff]
  %v23 = vld [vmem:[%s0 + $0x30] sm:$0xff]
  %v24 = vld [vmem:[%s0 + $0x38] sm:$0xff]
  %v25 = vld [vmem:[%s0 + $0x40] sm:$0xff]
  %v26 = vld [vmem:[%s0 + $0x48] sm:$0xff]
  %v27 = vld [vmem:[%s0 + $0x50] sm:$0xff]
  %v28 = vld [vmem:[%s0 + $0x58] sm:$0xff]
  %v29 = vld [vmem:[%s0 + $0x60] sm:$0xff]
  %v30 = vld [vmem:[%s0 + $0x68] sm:$0xff]
  %v31 = vld [vmem:[%s0 + $0x70] sm:$0xff]
  %v32 = vld [vmem:[%s0 + $0x78] sm:$0xff]
  %v33 = vld [vmem:[%s1] sm:$0x1]
  %vm34 = vcmask 64512
  %v35 = vsel %vm34, %v17, 0.0
  %v36 = vsel %vm34, %v18, 0.0
  %v37 = vadd.f32 %v35, %v36
  %v38 = vsel %vm34, %v19, 0.0
  %v39 = vadd.f32 %v37, %v38
  %v40 = vsel %vm34, %v20, 0.0
  %v41 = vadd.f32 %v39, %v40
  %v42 = vsel %vm34, %v21, 0.0
  %v43 = vadd.f32 %v41, %v42
  %v44 = vsel %vm34, %v22, 0.0
  %v45 = vadd.f32 %v43, %v44
  %v46 = vsel %vm34, %v23, 0.0
  %v47 = vadd.f32 %v45, %v46
  %v48 = vsel %vm34, %v24, 0.0
  %v49 = vadd.f32 %v47, %v48
  %v50 = vsel %vm34, %v25, 0.0
  %v51 = vadd.f32 %v49, %v50
  %v52 = vsel %vm34, %v26, 0.0
  %v53 = vadd.f32 %v51, %v52
  %v54 = vsel %vm34, %v27, 0.0
  %v55 = vadd.f32 %v53, %v54
  %v56 = vsel %vm34, %v28, 0.0
  %v57 = vadd.f32 %v55, %v56
  %v58 = vsel %vm34, %v29, 0.0
  %v59 = vadd.f32 %v57, %v58
  %v60 = vsel %vm34, %v30, 0.0
  %v61 = vadd.f32 %v59, %v60
  %v62 = vsel %vm34, %v31, 0.0
  %v63 = vadd.f32 %v61, %v62
  %v64 = vsel %vm34, %v32, 0.0
  %v65 = vadd.f32 %v63, %v64
  %v66 = vrot.slane %v65, 4
  %v67 = vadd.f32 %v65, %v66
  %v68 = vrot.slane %v67, 2
  %v69 = vadd.f32 %v67, %v68
  %v70 = vrot.slane %v69, 1
  %v71 = vadd.f32 %v69, %v70
  %v72 = vadd.f32 %v33, %v71
  %vm73 = vcmask 57344
  %74 = vst.msk [vmem:[%s1] sm:$0x1] %vm73, %v72
  %v75 = vld [vmem:[%s2] sm:$0x1]
  %v76 = vmul.f32 %v17, %v17
  %v77 = vmul.f32 %v18, %v18
  %v78 = vmul.f32 %v19, %v19
  %v79 = vmul.f32 %v20, %v20
  %v80 = vmul.f32 %v21, %v21
  %v81 = vmul.f32 %v22, %v22
  %v82 = vmul.f32 %v23, %v23
  %v83 = vmul.f32 %v24, %v24
  %v84 = vmul.f32 %v25, %v25
  %v85 = vmul.f32 %v26, %v26
  %v86 = vmul.f32 %v27, %v27
  %v87 = vmul.f32 %v28, %v28
  %v88 = vmul.f32 %v29, %v29
  %v89 = vmul.f32 %v30, %v30
  %v90 = vmul.f32 %v31, %v31
  %v91 = vmul.f32 %v32, %v32
  %v92 = vsel %vm34, %v76, 0.0
  %v93 = vsel %vm34, %v77, 0.0
  %v94 = vadd.f32 %v92, %v93
  %v95 = vsel %vm34, %v78, 0.0
  %v96 = vadd.f32 %v94, %v95
  %v97 = vsel %vm34, %v79, 0.0
  %v98 = vadd.f32 %v96, %v97
  %v99 = vsel %vm34, %v80, 0.0
  %v100 = vadd.f32 %v98, %v99
  %v101 = vsel %vm34, %v81, 0.0
  %v102 = vadd.f32 %v100, %v101
  %v103 = vsel %vm34, %v82, 0.0
  %v104 = vadd.f32 %v102, %v103
  %v105 = vsel %vm34, %v83, 0.0
  %v106 = vadd.f32 %v104, %v105
  %v107 = vsel %vm34, %v84, 0.0
  %v108 = vadd.f32 %v106, %v107
  %v109 = vsel %vm34, %v85, 0.0
  %v110 = vadd.f32 %v108, %v109
  %v111 = vsel %vm34, %v86, 0.0
  %v112 = vadd.f32 %v110, %v111
  %v113 = vsel %vm34, %v87, 0.0
  %v114 = vadd.f32 %v112, %v113
  %v115 = vsel %vm34, %v88, 0.0
  %v116 = vadd.f32 %v114, %v115
  %v117 = vsel %vm34, %v89, 0.0
  %v118 = vadd.f32 %v116, %v117
  %v119 = vsel %vm34, %v90, 0.0
  %v120 = vadd.f32 %v118, %v119
  %v121 = vsel %vm34, %v91, 0.0
  %v122 = vadd.f32 %v120, %v121
  %v123 = vrot.slane %v122, 4
  %v124 = vadd.f32 %v122, %v123
  %v125 = vrot.slane %v124, 2
  %v126 = vadd.f32 %v124, %v125
  %v127 = vrot.slane %v126, 1
  %v128 = vadd.f32 %v126, %v127
  %v129 = vadd.f32 %v75, %v128
  %130 = vst.msk [vmem:[%s2] sm:$0x1] %vm73, %v129
  // Predicated region
  $region10: #{resblock_forward.12} parent=0 // pred_check
    _
  $region11: #{resblock_forward.12} parent=0 // pred_check_branch
    %132 = sbr.rel (0) target = $region13
  $region12: #{resblock_forward.12} parent=0 // pred_region
    _
  $region13: #{resblock_forward.12} parent=0 // pred_fallthru
    _
  // Predicated region
  $region14: #{resblock_forward.12} parent=0 // pred_check
    _
  $region15: #{resblock_forward.12} parent=0 // pred_check_branch
    %134 = sbr.rel (0) target = $region17
  $region16: #{resblock_forward.12} parent=0 // pred_region
    _
  $region17: #{resblock_forward.12} parent=0 // pred_fallthru
    _
  // Predicated region
  $region18: #{resblock_forward.12} parent=0 // pred_check
    _
  $region19: #{resblock_forward.12} parent=0 // pred_check_branch
    %136 = sbr.rel (0) target = $region21
  $region20: #{resblock_forward.12} parent=0 // pred_region
    _
  $region21: #{resblock_forward.12} parent=0 // pred_fallthru
    _
  // Predicated region
  $region22: #{resblock_forward.12} parent=0 // pred_check
    _
  $region23: #{resblock_forward.12} parent=0 // pred_check_branch
    %138 = sbr.rel (0) target = $region25
  $region24: #{resblock_forward.12} parent=0 // pred_region
    _
  $region25: #{resblock_forward.12} parent=0 // pred_fallthru
    _

// kernel: resblock_forward.7
$region0: #{resblock_forward.7}
  #allocation0 [shape = 'u32[]', space=smem, size = 0x4, offset = 0x4, fixed_abs, tag = 'smem constant byte address 0x4 - core index']
  #allocation1 [shape = 'u32[144,128]{1,0:T(1,128)}', space=vmem, size = 0x12000, scoped, tag = 'internal scratch']
  %s0 = inlined_call_operand.vmem [shape: bf16[2,64,36], index: 0, kind: input, shape index: {}]
  %s1 = inlined_call_operand.vmem [shape: bf16[36,8], index: 1, kind: input, shape index: {}]
  %s2 = inlined_call_operand.vmem [shape: f32[1,8], index: 2, kind: input, shape index: {}]
  %s3 = inlined_call_operand.vmem [shape: bf16[36,8], index: 3, kind: input, shape index: {}]
  %s4 = inlined_call_operand.vmem [shape: f32[1,8], index: 4, kind: input, shape index: {}]
  %s5 = inlined_call_operand.vmem [shape: f32[2,64,8], index: 5, kind: output, shape index: {0}]
  %s6 = inlined_call_operand.vmem [shape: f32[2,64,8], index: 6, kind: output, shape index: {1}]
  %7 = xla_tuple %s5, %s6
  %s8 = sld [smem:[#allocation0]]
  $region61: #{resblock_forward.7} parent=0
    _
  %s10 = ssub.s32 1, %s8
  %s11 = scalar_select 0, %s10, %s8
  loop: start=0, step=1, limit=4
  $region2: #{resblock_forward.7} parent=0 // loop_pre_header
    _
  $region3: #{resblock_forward.7} parent=0 // loop_header
    %s13 = sphi 0, %s17
    %p14 = scmp.ge.s32.totalorder %s13, 4
    %s20 = sphi 0, %s32
    %s21 = sphi 0, %s28
    %s22 = sphi 0, %s20
    %s23 = sphi 0, %s21
    %s24 = sphi 0, %s22
    %s25 = sphi 0, %s23
    %s37 = sphi 0, %s39
    %s40 = sphi 0, %s37
    %s41 = sphi 0, %s40
    %s57 = sphi 0, %s41
    %s61 = sphi 0, %s61
    %s63 = sphi 0, %s61
    %s64 = sphi 0, %s63
    %s78 = sphi 0, %s64
    %s82 = sphi 0, %s82
    %s84 = sphi 0, %s82
    %s85 = sphi 0, %s84
    %s99 = sphi 0, %s85
    %s103 = sphi 0, %s103
    %s105 = sphi 0, %s103
    %s106 = sphi 0, %s105
    %s120 = sphi 0, %s106
    %s124 = sphi 0, %s124
    %s126 = sphi 0, %s124
    %s127 = sphi 0, %s126
    %s141 = sphi 0, %s127
    %s149 = sphi 0, %s151
    %s152 = sphi 0, %s149
    %s153 = sphi 0, %s152
    %s169 = sphi 0, %s153
    %s177 = sphi 0, %s179
    %s180 = sphi 0, %s177
    %s181 = sphi 0, %s180
    %s197 = sphi 0, %s181
  $region4: #{resblock_forward.7} parent=0 // loop_header_branch
    %16 = sbr.rel (%p14) target = $region8
  $region5: #{resblock_forward.7} parent=0 // loop_body
    %s18 = ssub.s32 %s13, 1
    %s19 = ssub.s32 %s13, 2
    %s26 = sadd.s32 1, %s21
    %p27 = scmp.ge.s32.totalorder %s26, 1
    %s28 = scalar_select %p27, 0, %s26
    %s29 = sadd.s32 1, %s20
    %s30 = scalar_select %p27, %s29, %s20
    %p31 = scmp.ge.s32.totalorder %s30, 2
    %s32 = scalar_select %p31, 0, %s30
    %s33 = ssub.s32 %s20, %s32
    %s34 = ssub.s32 %s21, %s28
    %s35 = sor.u32 %s33, %s34
    %p36 = scmp.eq.s32.totalorder %s35, 0
    %s38 = sadd.s32 %s37, 1
    %s39 = scalar_select %p36, %s37, %s38
    %p42 = pneg %p36
    %p43 = scmp.eq.s32.totalorder %s13, 1
    %p44 = por %p42, %p43
    %p45 = scmp.ne.s32.totalorder %s37, %s40
    %p46 = scmp.eq.s32.totalorder %s13, 0
    %p47 = por %p45, %p46
    %p48 = scmp.ne.s32.totalorder %s37, %s40
    %p49 = scmp.eq.s32.totalorder %s18, 1
    %p50 = por %p48, %p49
    %p51 = scmp.ne.s32.totalorder %s40, %s41
    %p52 = scmp.eq.s32.totalorder %s18, 0
    %p53 = por %p51, %p52
    %p54 = scmp.ne.s32.totalorder %s40, %s41
    %p55 = scmp.eq.s32.totalorder %s19, 1
    %p56 = por %p54, %p55
    %p58 = scmp.ne.s32.totalorder %s41, %s57
    %p59 = scmp.eq.s32.totalorder %s19, 0
    %p60 = por %p58, %p59
    %s62 = sadd.s32 %s61, 1
    %p65 = scmp.eq.s32.totalorder %s13, 1
    %p66 = scmp.ne.s32.totalorder %s61, %s63
    %p67 = scmp.eq.s32.totalorder %s13, 0
    %p68 = por %p66, %p67
    %p69 = scmp.ne.s32.totalorder %s61, %s63
    %p70 = scmp.eq.s32.totalorder %s18, 1
    %p71 = por %p69, %p70
    %p72 = scmp.ne.s32.totalorder %s63, %s64
    %p73 = scmp.eq.s32.totalorder %s18, 0
    %p74 = por %p72, %p73
    %p75 = scmp.ne.s32.totalorder %s63, %s64
    %p76 = scmp.eq.s32.totalorder %s19, 1
    %p77 = por %p75, %p76
    %p79 = scmp.ne.s32.totalorder %s64, %s78
    %p80 = scmp.eq.s32.totalorder %s19, 0
    %p81 = por %p79, %p80
    %s83 = sadd.s32 %s82, 1
    %p86 = scmp.eq.s32.totalorder %s13, 1
    %p87 = scmp.ne.s32.totalorder %s82, %s84
    %p88 = scmp.eq.s32.totalorder %s13, 0
    %p89 = por %p87, %p88
    %p90 = scmp.ne.s32.totalorder %s82, %s84
    %p91 = scmp.eq.s32.totalorder %s18, 1
    %p92 = por %p90, %p91
    %p93 = scmp.ne.s32.totalorder %s84, %s85
    %p94 = scmp.eq.s32.totalorder %s18, 0
    %p95 = por %p93, %p94
    %p96 = scmp.ne.s32.totalorder %s84, %s85
    %p97 = scmp.eq.s32.totalorder %s19, 1
    %p98 = por %p96, %p97
    %p100 = scmp.ne.s32.totalorder %s85, %s99
    %p101 = scmp.eq.s32.totalorder %s19, 0
    %p102 = por %p100, %p101
    %s104 = sadd.s32 %s103, 1
    %p107 = scmp.eq.s32.totalorder %s13, 1
    %p108 = scmp.ne.s32.totalorder %s103, %s105
    %p109 = scmp.eq.s32.totalorder %s13, 0
    %p110 = por %p108, %p109
    %p111 = scmp.ne.s32.totalorder %s103, %s105
    %p112 = scmp.eq.s32.totalorder %s18, 1
    %p113 = por %p111, %p112
    %p114 = scmp.ne.s32.totalorder %s105, %s106
    %p115 = scmp.eq.s32.totalorder %s18, 0
    %p116 = por %p114, %p115
    %p117 = scmp.ne.s32.totalorder %s105, %s106
    %p118 = scmp.eq.s32.totalorder %s19, 1
    %p119 = por %p117, %p118
    %p121 = scmp.ne.s32.totalorder %s106, %s120
    %p122 = scmp.eq.s32.totalorder %s19, 0
    %p123 = por %p121, %p122
    %s125 = sadd.s32 %s124, 1
    %p128 = scmp.eq.s32.totalorder %s13, 1
    %p129 = scmp.ne.s32.totalorder %s124, %s126
    %p130 = scmp.eq.s32.totalorder %s13, 0
    %p131 = por %p129, %p130
    %p132 = scmp.ne.s32.totalorder %s124, %s126
    %p133 = scmp.eq.s32.totalorder %s18, 1
    %p134 = por %p132, %p133
    %p135 = scmp.ne.s32.totalorder %s126, %s127
    %p136 = scmp.eq.s32.totalorder %s18, 0
    %p137 = por %p135, %p136
    %p138 = scmp.ne.s32.totalorder %s126, %s127
    %p139 = scmp.eq.s32.totalorder %s19, 1
    %p140 = por %p138, %p139
    %p142 = scmp.ne.s32.totalorder %s127, %s141
    %p143 = scmp.eq.s32.totalorder %s19, 0
    %p144 = por %p142, %p143
    %s145 = ssub.s32 %s20, %s32
    %s146 = ssub.s32 %s21, %s28
    %s147 = sor.u32 %s145, %s146
    %p148 = scmp.eq.s32.totalorder %s147, 0
    %s150 = sadd.s32 %s149, 1
    %s151 = scalar_select %p148, %s149, %s150
    %p154 = pneg %p148
    %p155 = scmp.eq.s32.totalorder %s13, 1
    %p156 = por %p154, %p155
    %p157 = scmp.ne.s32.totalorder %s149, %s152
    %p158 = scmp.eq.s32.totalorder %s13, 0
    %p159 = por %p157, %p158
    %p160 = scmp.ne.s32.totalorder %s149, %s152
    %p161 = scmp.eq.s32.totalorder %s18, 1
    %p162 = por %p160, %p161
    %p163 = scmp.ne.s32.totalorder %s152, %s153
    %p164 = scmp.eq.s32.totalorder %s18, 0
    %p165 = por %p163, %p164
    %p166 = scmp.ne.s32.totalorder %s152, %s153
    %p167 = scmp.eq.s32.totalorder %s19, 1
    %p168 = por %p166, %p167
    %p170 = scmp.ne.s32.totalorder %s153, %s169
    %p171 = scmp.eq.s32.totalorder %s19, 0
    %p172 = por %p170, %p171
    %s173 = ssub.s32 %s20, %s32
    %s174 = ssub.s32 %s21, %s28
    %s175 = sor.u32 %s173, %s174
    %p176 = scmp.eq.s32.totalorder %s175, 0
    %s178 = sadd.s32 %s177, 1
    %s179 = scalar_select %p176, %s177, %s178
    %p182 = pneg %p176
    %p183 = scmp.eq.s32.totalorder %s13, 1
    %p184 = por %p182, %p183
    %p185 = scmp.ne.s32.totalorder %s177, %s180
    %p186 = scmp.eq.s32.totalorder %s13, 0
    %p187 = por %p185, %p186
    %p188 = scmp.ne.s32.totalorder %s177, %s180
    %p189 = scmp.eq.s32.totalorder %s18, 1
    %p190 = por %p188, %p189
    %p191 = scmp.ne.s32.totalorder %s180, %s181
    %p192 = scmp.eq.s32.totalorder %s18, 0
    %p193 = por %p191, %p192
    %p194 = scmp.ne.s32.totalorder %s180, %s181
    %p195 = scmp.eq.s32.totalorder %s19, 1
    %p196 = por %p194, %p195
    %p198 = scmp.ne.s32.totalorder %s181, %s197
    %p199 = scmp.eq.s32.totalorder %s19, 0
    %p200 = por %p198, %p199
    %p201 = scmp.le.s32.totalorder 1, %s13
    %p202 = scmp.lt.s32.totalorder %s13, 3
    %p203 = pnand %p201, %p202
    %p204 = pneg %p203
    // Predicated region
    $region9: #{resblock_forward.7} parent=5 // pred_check
      _
    $region10: #{resblock_forward.7} parent=5 // pred_check_branch
      %206 = sbr.rel (%p203) target = $region12
    $region11: #{resblock_forward.7} parent=5 // pred_region
      %s207 = ssub.s32 %s13, 1
      // Predicated region
      $region13: #{resblock_forward.7} parent=11 // pred_check
        %p208 = pneg %p74
      $region14: #{resblock_forward.7} parent=11 // pred_check_branch
        %210 = sbr.rel (%p208) target = $region16
      $region15: #{resblock_forward.7} parent=11 // pred_region
        _
      $region16: #{resblock_forward.7} parent=11 // pred_fallthru
        _
      // Predicated region
      $region17: #{resblock_forward.7} parent=11 // pred_check
        %p211 = pneg %p95
      $region18: #{resblock_forward.7} parent=11 // pred_check_branch
        %213 = sbr.rel (%p211) target = $region20
      $region19: #{resblock_forward.7} parent=11 // pred_region
        _
      $region20: #{resblock_forward.7} parent=11 // pred_fallthru
        _
      // Predicated region
      $region21: #{resblock_forward.7} parent=11 // pred_check
        %p214 = pneg %p116
      $region22: #{resblock_forward.7} parent=11 // pred_check_branch
        %216 = sbr.rel (%p214) target = $region24
      $region23: #{resblock_forward.7} parent=11 // pred_region
        _
      $region24: #{resblock_forward.7} parent=11 // pred_fallthru
        _
      // Predicated region
      $region25: #{resblock_forward.7} parent=11 // pred_check
        %p217 = pneg %p137
      $region26: #{resblock_forward.7} parent=11 // pred_check_branch
        %219 = sbr.rel (%p217) target = $region28
      $region27: #{resblock_forward.7} parent=11 // pred_region
        _
      $region28: #{resblock_forward.7} parent=11 // pred_fallthru
        _
    $region12: #{resblock_forward.7} parent=5 // pred_fallthru
      _
    %p220 = scmp.lt.s32.totalorder %s13, 2
    // Predicated region
    $region29: #{resblock_forward.7} parent=5 // pred_check
      %p221 = pneg %p220
    $region30: #{resblock_forward.7} parent=5 // pred_check_branch
      %223 = sbr.rel (%p221) target = $region32
    $region31: #{resblock_forward.7} parent=5 // pred_region
      // Predicated region
      $region33: #{resblock_forward.7} parent=31 // pred_check
        %p224 = pneg %p47
      $region34: #{resblock_forward.7} parent=31 // pred_check_branch
        %226 = sbr.rel (%p224) target = $region36
      $region35: #{resblock_forward.7} parent=31 // pred_region
        %s227 = smul.u32 8, %s21
        %p228 = scmp.lt.s32.totalorder %s20, 1
        %s229 = scalar_select %p228, %s20, 1
        %p230 = scmp.lt.s32.totalorder %s227, 7
        %s231 = scalar_select %p230, %s227, 7
        %s232 = smul.addr %s229, 8
        %s233 = sadd.s32 %s231, %s232
        %s234 = smul.addr %s233, 4
        %s235 = scalar_lea.vmem %s0, %s234
        %s236 = smul.u32 8, %s21
      $region36: #{resblock_forward.7} parent=31 // pred_fallthru
        _
    $region32: #{resblock_forward.7} parent=5 // pred_fallthru
      _
    %p237 = scmp.le.s32.totalorder 1, %s13
    %p238 = scmp.lt.s32.totalorder %s13, 3
    %p239 = pnand %p237, %p238
    %p240 = pneg %p239
    // Predicated region
    $region37: #{resblock_forward.7} parent=5 // pred_check
      _
    $region38: #{resblock_forward.7} parent=5 // pred_check_branch
      %242 = sbr.rel (%p239) target = $region40
    $region39: #{resblock_forward.7} parent=5 // pred_region
      %s243 = ssub.s32 %s13, 1
      %s244 = smul.u32 8, %s23
      %p245 = scmp.lt.s32.totalorder %s22, 1
      %s246 = scalar_select %p245, %s22, 1
      %p247 = scmp.lt.s32.totalorder %s244, 7
      %s248 = scalar_select %p247, %s244, 7
      %s249 = smul.addr %s246, 8
      %s250 = sadd.s32 %s248, %s249
      %s251 = smul.addr %s250, 4
      %s252 = scalar_lea.vmem %s0, %s251
      %p253 = pneg %p53
      %p254 = pneg %p50
      %p255 = pneg %p74
      %p256 = pneg %p71
      %p257 = pneg %p95
      %p258 = pneg %p92
      %p259 = pneg %p116
      %p260 = pneg %p113
      %p261 = pneg %p137
      %p262 = pneg %p134
      %p263 = pneg %p165
      %p264 = pneg %p162
      %s265 = smul.u32 8, %s23
      %p266 = scmp.lt.s32.totalorder %s22, 1
      %s267 = scalar_select %p266, %s22, 1
      %p268 = scmp.lt.s32.totalorder %s265, 7
      %s269 = scalar_select %p268, %s265, 7
      %s270 = smul.addr %s267, 8
      %s271 = sadd.s32 %s269, %s270
      %s272 = smul.addr %s271, 8
      %s273 = scalar_lea.vmem %s5, %s272
      %p274 = pneg %p193
      %p275 = pneg %p190
      %s276 = smul.u32 8, %s23
      %p277 = scmp.lt.s32.totalorder %s22, 1
      %s278 = scalar_select %p277, %s22, 1
      %p279 = scmp.lt.s32.totalorder %s276, 7
      %s280 = scalar_select %p279, %s276, 7
      %s281 = smul.addr %s278, 8
      %s282 = sadd.s32 %s280, %s281
      %s283 = smul.addr %s282, 8
      %s284 = scalar_lea.vmem %s6, %s283
      %s285 = smul.u32 8, %s23
      %p286 = scmp.lt.s32.totalorder %s22, 1
      %s287 = scalar_select %p286, %s22, 1
      %p288 = scmp.lt.s32.totalorder %s285, 7
      %s289 = scalar_select %p288, %s285, 7
      %s290 = smul.addr %s287, 8
      %s291 = sadd.s32 %s289, %s290
      %s292 = smul.addr %s291, 4
      %s293 = scalar_lea.vmem %s0, %s292
      %s294 = smul.u32 8, %s23
      %s295 = smul.u32 8, %s23
      %p296 = scmp.lt.s32.totalorder %s22, 1
      %s297 = scalar_select %p296, %s22, 1
      %p298 = scmp.lt.s32.totalorder %s295, 7
      %s299 = scalar_select %p298, %s295, 7
      %s300 = smul.addr %s297, 8
      %s301 = sadd.s32 %s299, %s300
      %s302 = smul.addr %s301, 8
      %s303 = scalar_lea.vmem %s5, %s302
      %s304 = smul.u32 8, %s23
      %s305 = smul.u32 8, %s23
      %p306 = scmp.lt.s32.totalorder %s22, 1
      %s307 = scalar_select %p306, %s22, 1
      %p308 = scmp.lt.s32.totalorder %s305, 7
      %s309 = scalar_select %p308, %s305, 7
      %s310 = smul.addr %s307, 8
      %s311 = sadd.s32 %s309, %s310
      %s312 = smul.addr %s311, 8
      %s313 = scalar_lea.vmem %s6, %s312
      %s314 = smul.u32 8, %s23
      %v316 = vld [vmem:[%s293] sm:$0xf]
      %v317 = vld [vmem:[%s293 + $0x4] sm:$0xf]
      %v318 = vld [vmem:[%s293 + $0x8] sm:$0xf]
      %v319 = vld [vmem:[%s293 + $0xc] sm:$0xf]
      %v320 = vld [vmem:[%s293 + $0x10] sm:$0xf]
      %v321 = vld [vmem:[%s293 + $0x14] sm:$0xf]
      %v322 = vld [vmem:[%s293 + $0x18] sm:$0xf]
      %v323 = vld [vmem:[%s293 + $0x1c] sm:$0xf]
      %v324 = vld [vmem:[%s1] sm:$0xf]
      %v325 = vld [vmem:[%s1 + $0x4] sm:$0xf]
      %v326 = vld [vmem:[%s1 + $0x8] sm:$0xf]
      %v327 = vld [vmem:[%s1 + $0xc] sm:$0xf]
      %v328 = vld [vmem:[%s1 + $0x10] sm:$0x3]
      %v329 = vld [vmem:[%s2] sm:$0x1]
      %v331 = vlaneseq
      %v332 = vshrl.u32 %v331, 7
      %v333 = vsub.s32 0, %v332
      %v334 = vrot.slane %v329, %v333
      %v344 = vunpack.c.l.b16 %v316
      %v345 = vunpack.c.l.b16 %v317
      %v346 = vunpack.c.l.b16 %v318
      %v347 = vunpack.c.l.b16 %v319
      %v348 = vunpack.c.l.b16 %v320
      %v349 = vunpack.c.l.b16 %v321
      %v350 = vunpack.c.l.b16 %v322
      %v351 = vunpack.c.l.b16 %v323
      %v352 = vpack.c.b16 %v345, %v344
      %v353 = vpack.c.b16 %v347, %v346
      %v354 = vpack.c.b16 %v349, %v348
      %v355 = vpack.c.b16 %v351, %v350
      %v361 = vunpack.c.l.b16 %v324
      %v362 = vunpack.c.l.b16 %v325
      %v363 = vunpack.c.l.b16 %v326
      %v364 = vunpack.c.l.b16 %v327
      %v365 = vunpack.c.l.b16 %v328
      %v366 = vpack.c.b16 %v362, %v361
      %v367 = vpack.c.b16 %v364, %v363
      %v368 = vpack.c.b16 %v365, %v365
      %vm371 = vcmask 293888
      %v373 = vsel %vm371, %v352, 0
      %v376 = vsel %vm371, %v353, 0
      %v379 = vsel %vm371, %v354, 0
      %v382 = vsel %vm371, %v355, 0
      %vm384 = vcmask 1041408
      %v386 = vsel %vm384, %v368, 0
      %388 = vmatprep.subr.bf16.mxu0 0
      %389 = vmatpush1.bf16.msra.mxu0 %v366
      %390 = vmatprep.subr.bf16.mxu0 0
      %391 = vmatpush1.bf16.msra.mxu0 %v367
      %392 = vmatprep.subr.bf16.mxu0 0
      %393 = vmatpush1.bf16.msra.mxu0 %v386
      %394 = vmatprep.subr.bf16.mxu0 0
      %395 = vmatpush1.bf16.msra.mxu0 0
      %396 = vmatprep.subr.bf16.mxu0 0
      %397 = vmatpush1.bf16.msra.mxu0 0
      %398 = vmatprep.subr.bf16.mxu0 0
      %399 = vmatpush1.bf16.msra.mxu0 0
      %400 = vmatprep.subr.bf16.mxu0 0
      %401 = vmatpush1.bf16.msra.mxu0 0
      %402 = vmatprep.subr.bf16.mxu0 0
      %403 = vmatpush1.bf16.msra.mxu0 0
      %404 = vmatprep.subr.bf16.mxu0 0
      %405 = vmatpush1.bf16.msra.mxu0 0
      %406 = vmatprep.subr.bf16.mxu0 0
      %407 = vmatpush1.bf16.msra.mxu0 0
      %408 = vmatprep.subr.bf16.mxu0 0
      %409 = vmatpush1.bf16.msra.mxu0 0
      %410 = vmatprep.subr.bf16.mxu0 0
      %411 = vmatpush1.bf16.msra.mxu0 0
      %412 = vmatprep.subr.bf16.mxu0 0
      %413 = vmatpush1.bf16.msra.mxu0 0
      %414 = vmatprep.subr.bf16.mxu0 0
      %415 = vmatpush1.bf16.msra.mxu0 0
      %416 = vmatprep.subr.bf16.mxu0 0
      %417 = vmatpush1.bf16.msra.mxu0 0
      %418 = vmatprep.subr.bf16.mxu0 0
      %419 = vmatpush1.bf16.msra.mxu0 0
      %420 = vmatprep.mubr.bf16.mxu0 0
      %421 = vmatmul.mubr.bf16.gmra.mrb[0].mxu0 %v373
      %v422 = vpop.f32.mrb[0].mxu0
      %v423 = vadd.f32 %v334, %v422
      %v424 = vpop.f32.mrb[0].mxu0
      %v425 = vpop.f32.mrb[0].mxu0
      %v426 = vadd.f32 %v334, %v425
      %v427 = vpop.f32.mrb[0].mxu0
      %428 = vmatprep.mubr.bf16.mxu0 0
      %429 = vmatmul.mubr.bf16.gmra.mrb[0].mxu0 %v376
      %v430 = vpop.f32.mrb[0].mxu0
      %v431 = vadd.f32 %v334, %v430
      %v432 = vpop.f32.mrb[0].mxu0
      %v433 = vpop.f32.mrb[0].mxu0
      %v434 = vadd.f32 %v334, %v433
      %v435 = vpop.f32.mrb[0].mxu0
      %436 = vmatprep.mubr.bf16.mxu0 0
      %437 = vmatmul.mubr.bf16.gmra.mrb[0].mxu0 %v379
      %v438 = vpop.f32.mrb[0].mxu0
      %v439 = vadd.f32 %v334, %v438
      %v440 = vpop.f32.mrb[0].mxu0
      %v441 = vpop.f32.mrb[0].mxu0
      %v442 = vadd.f32 %v334, %v441
      %v443 = vpop.f32.mrb[0].mxu0
      %444 = vmatprep.mubr.bf16.mxu0 0
      %445 = vmatmul.mubr.bf16.gmra.mrb[0].mxu0 %v382
      %v446 = vpop.f32.mrb[0].mxu0
      %v447 = vadd.f32 %v334, %v446
      %v448 = vpop.f32.mrb[0].mxu0
      %v449 = vpop.f32.mrb[0].mxu0
      %v450 = vadd.f32 %v334, %v449
      %v451 = vpop.f32.mrb[0].mxu0
      %452 = vdwg.mxu0
      %vm453 = vcmask 64512
      %454 = vst.msk [vmem:[%s303] sm:$0xff] %vm453, %v423
      %455 = vst.msk [vmem:[%s303 + $0x8] sm:$0xff] %vm453, %v426
      %456 = vst.msk [vmem:[%s303 + $0x10] sm:$0xff] %vm453, %v431
      %457 = vst.msk [vmem:[%s303 + $0x18] sm:$0xff] %vm453, %v434
      %458 = vst.msk [vmem:[%s303 + $0x20] sm:$0xff] %vm453, %v439
      %459 = vst.msk [vmem:[%s303 + $0x28] sm:$0xff] %vm453, %v442
      %460 = vst.msk [vmem:[%s303 + $0x30] sm:$0xff] %vm453, %v447
      %461 = vst.msk [vmem:[%s303 + $0x38] sm:$0xff] %vm453, %v450
      %v462 = vld [vmem:[%s3] sm:$0xf]
      %v463 = vld [vmem:[%s3 + $0x4] sm:$0xf]
      %v464 = vld [vmem:[%s3 + $0x8] sm:$0xf]
      %v465 = vld [vmem:[%s3 + $0xc] sm:$0xf]
      %v466 = vld [vmem:[%s3 + $0x10] sm:$0x3]
      %v467 = vld [vmem:[%s4] sm:$0x1]
      %v469 = vlaneseq
      %v470 = vshrl.u32 %v469, 7
      %v471 = vsub.s32 0, %v470
      %v472 = vrot.slane %v467, %v471
      %v479 = vunpack.c.l.b16 %v462
      %v480 = vunpack.c.l.b16 %v463
      %v481 = vunpack.c.l.b16 %v464
      %v482 = vunpack.c.l.b16 %v465
      %v483 = vunpack.c.l.b16 %v466
      %v484 = vpack.c.b16 %v480, %v479
      %v485 = vpack.c.b16 %v482, %v481
      %v486 = vpack.c.b16 %v483, %v483
      %v490 = vsel %vm384, %v486, 0
      %492 = vmatprep.subr.bf16.mxu0 0
      %493 = vmatpush1.bf16.msra.mxu0 %v484
      %494 = vmatprep.subr.bf16.mxu0 0
      %495 = vmatpush1.bf16.msra.mxu0 %v485
      %496 = vmatprep.subr.bf16.mxu0 0
      %497 = vmatpush1.bf16.msra.mxu0 %v490
      %498 = vmatprep.subr.bf16.mxu0 0
      %499 = vmatpush1.bf16.msra.mxu0 0
      %500 = vmatprep.subr.bf16.mxu0 0
      %501 = vmatpush1.bf16.msra.mxu0 0
      %502 = vmatprep.subr.bf16.mxu0 0
      %503 = vmatpush1.bf16.msra.mxu0 0
      %504 = vmatprep.subr.bf16.mxu0 0
      %505 = vmatpush1.bf16.msra.mxu0 0
      %506 = vmatprep.subr.bf16.mxu0 0
      %507 = vmatpush1.bf16.msra.mxu0 0
      %508 = vmatprep.subr.bf16.mxu0 0
      %509 = vmatpush1.bf16.msra.mxu0 0
      %510 = vmatprep.subr.bf16.mxu0 0
      %511 = vmatpush1.bf16.msra.mxu0 0
      %512 = vmatprep.subr.bf16.mxu0 0
      %513 = vmatpush1.bf16.msra.mxu0 0
      %514 = vmatprep.subr.bf16.mxu0 0
      %515 = vmatpush1.bf16.msra.mxu0 0
      %516 = vmatprep.subr.bf16.mxu0 0
      %517 = vmatpush1.bf16.msra.mxu0 0
      %518 = vmatprep.subr.bf16.mxu0 0
      %519 = vmatpush1.bf16.msra.mxu0 0
      %520 = vmatprep.subr.bf16.mxu0 0
      %521 = vmatpush1.bf16.msra.mxu0 0
      %522 = vmatprep.subr.bf16.mxu0 0
      %523 = vmatpush1.bf16.msra.mxu0 0
      %524 = vmatprep.mubr.bf16.mxu0 0
      %525 = vmatmul.mubr.bf16.gmra.mrb[0].mxu0 %v373
      %v526 = vpop.f32.mrb[0].mxu0
      %v527 = vadd.f32 %v472, %v526
      %v528 = vpop.f32.mrb[0].mxu0
      %v529 = vpop.f32.mrb[0].mxu0
      %v530 = vadd.f32 %v472, %v529
      %v531 = vpop.f32.mrb[0].mxu0
      %532 = vmatprep.mubr.bf16.mxu0 0
      %533 = vmatmul.mubr.bf16.gmra.mrb[0].mxu0 %v376
      %v534 = vpop.f32.mrb[0].mxu0
      %v535 = vadd.f32 %v472, %v534
      %v536 = vpop.f32.mrb[0].mxu0
      %v537 = vpop.f32.mrb[0].mxu0
      %v538 = vadd.f32 %v472, %v537
      %v539 = vpop.f32.mrb[0].mxu0
      %540 = vmatprep.mubr.bf16.mxu0 0
      %541 = vmatmul.mubr.bf16.gmra.mrb[0].mxu0 %v379
      %v542 = vpop.f32.mrb[0].mxu0
      %v543 = vadd.f32 %v472, %v542
      %v544 = vpop.f32.mrb[0].mxu0
      %v545 = vpop.f32.mrb[0].mxu0
      %v546 = vadd.f32 %v472, %v545
      %v547 = vpop.f32.mrb[0].mxu0
      %548 = vmatprep.mubr.bf16.mxu0 0
      %549 = vmatmul.mubr.bf16.gmra.mrb[0].mxu0 %v382
      %v550 = vpop.f32.mrb[0].mxu0
      %v551 = vadd.f32 %v472, %v550
      %v552 = vpop.f32.mrb[0].mxu0
      %v553 = vpop.f32.mrb[0].mxu0
      %v554 = vadd.f32 %v472, %v553
      %v555 = vpop.f32.mrb[0].mxu0
      %556 = vdwg.mxu0
      %557 = vst.msk [vmem:[%s313] sm:$0xff] %vm453, %v527
      %558 = vst.msk [vmem:[%s313 + $0x8] sm:$0xff] %vm453, %v530
      %559 = vst.msk [vmem:[%s313 + $0x10] sm:$0xff] %vm453, %v535
      %560 = vst.msk [vmem:[%s313 + $0x18] sm:$0xff] %vm453, %v538
      %561 = vst.msk [vmem:[%s313 + $0x20] sm:$0xff] %vm453, %v543
      %562 = vst.msk [vmem:[%s313 + $0x28] sm:$0xff] %vm453, %v546
      %563 = vst.msk [vmem:[%s313 + $0x30] sm:$0xff] %vm453, %v551
      %564 = vst.msk [vmem:[%s313 + $0x38] sm:$0xff] %vm453, %v554
      %s565 = smul.u32 8, %s23
      %p566 = scmp.lt.s32.totalorder %s22, 1
      %s567 = scalar_select %p566, %s22, 1
      %p568 = scmp.lt.s32.totalorder %s565, 7
      %s569 = scalar_select %p568, %s565, 7
      %s570 = smul.addr %s567, 8
      %s571 = sadd.s32 %s569, %s570
      %s572 = smul.addr %s571, 8
      %s573 = scalar_lea.vmem %s5, %s572
      %s574 = smul.u32 8, %s23
      %p575 = scmp.lt.s32.totalorder %s22, 1
      %s576 = scalar_select %p575, %s22, 1
      %p577 = scmp.lt.s32.totalorder %s574, 7
      %s578 = scalar_select %p577, %s574, 7
      %s579 = smul.addr %s576, 8
      %s580 = sadd.s32 %s578, %s579
      %s581 = smul.addr %s580, 8
      %s582 = scalar_lea.vmem %s6, %s581
      // Predicated region
      $region41: #{resblock_forward.7} parent=39 // pred_check
        %p583 = pneg %p162
      $region42: #{resblock_forward.7} parent=39 // pred_check_branch
        %585 = sbr.rel (%p583) target = $region44
      $region43: #{resblock_forward.7} parent=39 // pred_region
        %s586 = smul.u32 8, %s23
      $region44: #{resblock_forward.7} parent=39 // pred_fallthru
        _
      // Predicated region
      $region45: #{resblock_forward.7} parent=39 // pred_check
        %p587 = pneg %p190
      $region46: #{resblock_forward.7} parent=39 // pred_check_branch
        %589 = sbr.rel (%p587) target = $region48
      $region47: #{resblock_forward.7} parent=39 // pred_region
        %s590 = smul.u32 8, %s23
      $region48: #{resblock_forward.7} parent=39 // pred_fallthru
        _
    $region40: #{resblock_forward.7} parent=5 // pred_fallthru
      _
    %p591 = scmp.le.s32.totalorder 2, %s13
    // Predicated region
    $region49: #{resblock_forward.7} parent=5 // pred_check
      %p592 = pneg %p591
    $region50: #{resblock_forward.7} parent=5 // pred_check_branch
      %594 = sbr.rel (%p592) target = $region52
    $region51: #{resblock_forward.7} parent=5 // pred_region
      %s595 = ssub.s32 %s13, 2
      // Predicated region
      $region53: #{resblock_forward.7} parent=51 // pred_check
        %p596 = pneg %p168
      $region54: #{resblock_forward.7} parent=51 // pred_check_branch
        %598 = sbr.rel (%p596) target = $region56
      $region55: #{resblock_forward.7} parent=51 // pred_region
        %s599 = smul.u32 8, %s25
        %p600 = scmp.lt.s32.totalorder %s24, 1
        %s601 = scalar_select %p600, %s24, 1
        %p602 = scmp.lt.s32.totalorder %s599, 7
        %s603 = scalar_select %p602, %s599, 7
        %s604 = smul.addr %s601, 8
        %s605 = sadd.s32 %s603, %s604
        %s606 = smul.addr %s605, 8
        %s607 = scalar_lea.vmem %s5, %s606
      $region56: #{resblock_forward.7} parent=51 // pred_fallthru
        _
      // Predicated region
      $region57: #{resblock_forward.7} parent=51 // pred_check
        %p608 = pneg %p196
      $region58: #{resblock_forward.7} parent=51 // pred_check_branch
        %610 = sbr.rel (%p608) target = $region60
      $region59: #{resblock_forward.7} parent=51 // pred_region
        %s611 = smul.u32 8, %s25
        %p612 = scmp.lt.s32.totalorder %s24, 1
        %s613 = scalar_select %p612, %s24, 1
        %p614 = scmp.lt.s32.totalorder %s611, 7
        %s615 = scalar_select %p614, %s611, 7
        %s616 = smul.addr %s613, 8
        %s617 = sadd.s32 %s615, %s616
        %s618 = smul.addr %s617, 8
        %s619 = scalar_lea.vmem %s6, %s618
      $region60: #{resblock_forward.7} parent=51 // pred_fallthru
        _
    $region52: #{resblock_forward.7} parent=5 // pred_fallthru
      _
  $region6: #{resblock_forward.7} parent=0 // loop_footer
    %s17 = sadd.s32 1, %s13
  $region7: #{resblock_forward.7} parent=0 // loop_footer_branch
    %12 = sbr.rel target = $region3
  $region8: #{resblock_forward.7} parent=0 // loop_exit
    _

// kernel: resblock_forward.9
$region0: #{resblock_forward.9}
  #allocation0 [shape = 'u32[]', space=smem, size = 0x4, offset = 0x4, fixed_abs, tag = 'smem constant byte address 0x4 - core index']
  #allocation1 [shape = 'u32[144,128]{1,0:T(1,128)}', space=vmem, size = 0x12000, scoped, tag = 'internal scratch']
  %s0 = inlined_call_operand.vmem [shape: f32[128,8], index: 0, kind: input, shape index: {}]
  %s1 = inlined_call_operand.vmem [shape: f32[1,8], index: 1, kind: input, shape index: {}]
  %s2 = inlined_call_operand.vmem [shape: f32[1,8], index: 2, kind: input, shape index: {}]
  %s3 = inlined_call_operand.vmem [shape: bf16[128,8], index: 3, kind: output, shape index: {}]
  %s4 = sld [smem:[#allocation0]]
  $region22: #{resblock_forward.9} parent=0
    _
  %s6 = ssub.s32 1, %s4
  %s7 = scalar_select 0, %s6, %s4
  // Predicated region
  $region2: #{resblock_forward.9} parent=0 // pred_check
    _
  $region3: #{resblock_forward.9} parent=0 // pred_check_branch
    %9 = sbr.rel (0) target = $region5
  $region4: #{resblock_forward.9} parent=0 // pred_region
    _
  $region5: #{resblock_forward.9} parent=0 // pred_fallthru
    _
  // Predicated region
  $region6: #{resblock_forward.9} parent=0 // pred_check
    _
  $region7: #{resblock_forward.9} parent=0 // pred_check_branch
    %11 = sbr.rel (0) target = $region9
  $region8: #{resblock_forward.9} parent=0 // pred_region
    _
  $region9: #{resblock_forward.9} parent=0 // pred_fallthru
    _
  // Predicated region
  $region10: #{resblock_forward.9} parent=0 // pred_check
    _
  $region11: #{resblock_forward.9} parent=0 // pred_check_branch
    %13 = sbr.rel (0) target = $region13
  $region12: #{resblock_forward.9} parent=0 // pred_region
    _
  $region13: #{resblock_forward.9} parent=0 // pred_fallthru
    _
  %v14 = vld [vmem:[%s0] sm:$0xff]
  %v15 = vld [vmem:[%s0 + $0x8] sm:$0xff]
  %v16 = vld [vmem:[%s0 + $0x10] sm:$0xff]
  %v17 = vld [vmem:[%s0 + $0x18] sm:$0xff]
  %v18 = vld [vmem:[%s0 + $0x20] sm:$0xff]
  %v19 = vld [vmem:[%s0 + $0x28] sm:$0xff]
  %v20 = vld [vmem:[%s0 + $0x30] sm:$0xff]
  %v21 = vld [vmem:[%s0 + $0x38] sm:$0xff]
  %v22 = vld [vmem:[%s0 + $0x40] sm:$0xff]
  %v23 = vld [vmem:[%s0 + $0x48] sm:$0xff]
  %v24 = vld [vmem:[%s0 + $0x50] sm:$0xff]
  %v25 = vld [vmem:[%s0 + $0x58] sm:$0xff]
  %v26 = vld [vmem:[%s0 + $0x60] sm:$0xff]
  %v27 = vld [vmem:[%s0 + $0x68] sm:$0xff]
  %v28 = vld [vmem:[%s0 + $0x70] sm:$0xff]
  %v29 = vld [vmem:[%s0 + $0x78] sm:$0xff]
  %v30 = vld [vmem:[%s1] sm:$0x1]
  %v32 = vlaneseq
  %v33 = vshrl.u32 %v32, 7
  %v34 = vsub.s32 0, %v33
  %v35 = vrot.slane %v30, %v34
  %v37 = vmul.f32 %v14, %v35
  %v38 = vmul.f32 %v15, %v35
  %v39 = vmul.f32 %v16, %v35
  %v40 = vmul.f32 %v17, %v35
  %v41 = vmul.f32 %v18, %v35
  %v42 = vmul.f32 %v19, %v35
  %v43 = vmul.f32 %v20, %v35
  %v44 = vmul.f32 %v21, %v35
  %v45 = vmul.f32 %v22, %v35
  %v46 = vmul.f32 %v23, %v35
  %v47 = vmul.f32 %v24, %v35
  %v48 = vmul.f32 %v25, %v35
  %v49 = vmul.f32 %v26, %v35
  %v50 = vmul.f32 %v27, %v35
  %v51 = vmul.f32 %v28, %v35
  %v52 = vmul.f32 %v29, %v35
  %v53 = vld [vmem:[%s2] sm:$0x1]
  %v55 = vlaneseq
  %v56 = vshrl.u32 %v55, 7
  %v57 = vsub.s32 0, %v56
  %v58 = vrot.slane %v53, %v57
  %v60 = vadd.f32 %v37, %v58
  %v61 = vadd.f32 %v38, %v58
  %v62 = vadd.f32 %v39, %v58
  %v63 = vadd.f32 %v40, %v58
  %v64 = vadd.f32 %v41, %v58
  %v65 = vadd.f32 %v42, %v58
  %v66 = vadd.f32 %v43, %v58
  %v67 = vadd.f32 %v44, %v58
  %v68 = vadd.f32 %v45, %v58
  %v69 = vadd.f32 %v46, %v58
  %v70 = vadd.f32 %v47, %v58
  %v71 = vadd.f32 %v48, %v58
  %v72 = vadd.f32 %v49, %v58
  %v73 = vadd.f32 %v50, %v58
  %v74 = vadd.f32 %v51, %v58
  %v75 = vadd.f32 %v52, %v58
  %vm76 = vcmp.gt.f32.partialorder %v60, 0.0
  %vm77 = vcmp.gt.f32.partialorder %v61, 0.0
  %vm78 = vcmp.gt.f32.partialorder %v62, 0.0
  %vm79 = vcmp.gt.f32.partialorder %v63, 0.0
  %vm80 = vcmp.gt.f32.partialorder %v64, 0.0
  %vm81 = vcmp.gt.f32.partialorder %v65, 0.0
  %vm82 = vcmp.gt.f32.partialorder %v66, 0.0
  %vm83 = vcmp.gt.f32.partialorder %v67, 0.0
  %vm84 = vcmp.gt.f32.partialorder %v68, 0.0
  %vm85 = vcmp.gt.f32.partialorder %v69, 0.0
  %vm86 = vcmp.gt.f32.partialorder %v70, 0.0
  %vm87 = vcmp.gt.f32.partialorder %v71, 0.0
  %vm88 = vcmp.gt.f32.partialorder %v72, 0.0
  %vm89 = vcmp.gt.f32.partialorder %v73, 0.0
  %vm90 = vcmp.gt.f32.partialorder %v74, 0.0
  %vm91 = vcmp.gt.f32.partialorder %v75, 0.0
  %v92 = vmul.f32 %v60, 0.2
  %v93 = vmul.f32 %v61, 0.2
  %v94 = vmul.f32 %v62, 0.2
  %v95 = vmul.f32 %v63, 0.2
  %v96 = vmul.f32 %v64, 0.2
  %v97 = vmul.f32 %v65, 0.2
  %v98 = vmul.f32 %v66, 0.2
  %v99 = vmul.f32 %v67, 0.2
  %v100 = vmul.f32 %v68, 0.2
  %v101 = vmul.f32 %v69, 0.2
  %v102 = vmul.f32 %v70, 0.2
  %v103 = vmul.f32 %v71, 0.2
  %v104 = vmul.f32 %v72, 0.2
  %v105 = vmul.f32 %v73, 0.2
  %v106 = vmul.f32 %v74, 0.2
  %v107 = vmul.f32 %v75, 0.2
  %v108 = vsel %vm76, %v60, %v92
  %v109 = vsel %vm77, %v61, %v93
  %v110 = vsel %vm78, %v62, %v94
  %v111 = vsel %vm79, %v63, %v95
  %v112 = vsel %vm80, %v64, %v96
  %v113 = vsel %vm81, %v65, %v97
  %v114 = vsel %vm82, %v66, %v98
  %v115 = vsel %vm83, %v67, %v99
  %v116 = vsel %vm84, %v68, %v100
  %v117 = vsel %vm85, %v69, %v101
  %v118 = vsel %vm86, %v70, %v102
  %v119 = vsel %vm87, %v71, %v103
  %v120 = vsel %vm88, %v72, %v104
  %v121 = vsel %vm89, %v73, %v105
  %v122 = vsel %vm90, %v74, %v106
  %v123 = vsel %vm91, %v75, %v107
  %v124 = vpack.c.bf16 %v109, %v108
  %v125 = vpack.c.bf16 %v111, %v110
  %v126 = vpack.c.bf16 %v113, %v112
  %v127 = vpack.c.bf16 %v115, %v114
  %v128 = vpack.c.bf16 %v117, %v116
  %v129 = vpack.c.bf16 %v119, %v118
  %v130 = vpack.c.bf16 %v121, %v120
  %v131 = vpack.c.bf16 %v123, %v122
  %v140 = vunpack.c.l.b16 %v124
  %v141 = vunpack.c.h.b16 %v124
  %v142 = vunpack.c.l.b16 %v125
  %v143 = vunpack.c.h.b16 %v125
  %v144 = vunpack.c.l.b16 %v126
  %v145 = vunpack.c.h.b16 %v126
  %v146 = vunpack.c.l.b16 %v127
  %v147 = vunpack.c.h.b16 %v127
  %v148 = vunpack.c.l.b16 %v128
  %v149 = vunpack.c.h.b16 %v128
  %v150 = vunpack.c.l.b16 %v129
  %v151 = vunpack.c.h.b16 %v129
  %v152 = vunpack.c.l.b16 %v130
  %v153 = vunpack.c.h.b16 %v130
  %v154 = vunpack.c.l.b16 %v131
  %v155 = vunpack.c.h.b16 %v131
  %v156 = vpack.c.b16 %v140, %v140
  %v157 = vpack.c.b16 %v141, %v141
  %v158 = vpack.c.b16 %v142, %v142
  %v159 = vpack.c.b16 %v143, %v143
  %v160 = vpack.c.b16 %v144, %v144
  %v161 = vpack.c.b16 %v145, %v145
  %v162 = vpack.c.b16 %v146, %v146
  %v163 = vpack.c.b16 %v147, %v147
  %v164 = vpack.c.b16 %v148, %v148
  %v165 = vpack.c.b16 %v149, %v149
  %v166 = vpack.c.b16 %v150, %v150
  %v167 = vpack.c.b16 %v151, %v151
  %v168 = vpack.c.b16 %v152, %v152
  %v169 = vpack.c.b16 %v153, %v153
  %v170 = vpack.c.b16 %v154, %v154
  %v171 = vpack.c.b16 %v155, %v155
  %vm188 = vcmask 60416
  %189 = vst.msk [vmem:[%s3] sm:$0xf] %vm188, %v156
  %190 = vst.msk [vmem:[%s3 + $0x4] sm:$0xf] %vm188, %v157
  %191 = vst.msk [vmem:[%s3 + $0x8] sm:$0xf] %vm188, %v158
  %192 = vst.msk [vmem:[%s3 + $0xc] sm:$0xf] %vm188, %v159
  %193 = vst.msk [vmem:[%s3 + $0x10] sm:$0xf] %vm188, %v160
  %194 = vst.msk [vmem:[%s3 + $0x14] sm:$0xf] %vm188, %v161
  %195 = vst.msk [vmem:[%s3 + $0x18] sm:$0xf] %vm188, %v162
  %196 = vst.msk [vmem:[%s3 + $0x1c] sm:$0xf] %vm188, %v163
  %197 = vst.msk [vmem:[%s3 + $0x20] sm:$0xf] %vm188, %v164
  %198 = vst.msk [vmem:[%s3 + $0x24] sm:$0xf] %vm188, %v165
  %199 = vst.msk [vmem:[%s3 + $0x28] sm:$0xf] %vm188, %v166
  %200 = vst.msk [vmem:[%s3 + $0x2c] sm:$0xf] %vm188, %v167
  %201 = vst.msk [vmem:[%s3 + $0x30] sm:$0xf] %vm188, %v168
  %202 = vst.msk [vmem:[%s3 + $0x34] sm:$0xf] %vm188, %v169
  %203 = vst.msk [vmem:[%s3 + $0x38] sm:$0xf] %vm188, %v170
  %204 = vst.msk [vmem:[%s3 + $0x3c] sm:$0xf] %vm188, %v171
  // Predicated region
  $region14: #{resblock_forward.9} parent=0 // pred_check
    _
  $region15: #{resblock_forward.9} parent=0 // pred_check_branch
    %206 = sbr.rel (0) target = $region17
  $region16: #{resblock_forward.9} parent=0 // pred_region
    _
  $region17: #{resblock_forward.9} parent=0 // pred_fallthru
    _
  // Predicated region
  $region18: #{resblock_forward.9} parent=0 // pred_check
    _
  $region19: #{resblock_forward.9} parent=0 // pred_check_branch
    %208 = sbr.rel (0) target = $region21
  $region20: #{resblock_forward.9} parent=0 // pred_region
    _
  $region21: #{resblock_forward.9} parent=0 // pred_fallthru
    _

// kernel: resblock_forward.13
$region0: #{resblock_forward.13}
  #allocation0 [shape = 'u32[]', space=smem, size = 0x4, offset = 0x4, fixed_abs, tag = 'smem constant byte address 0x4 - core index']
  #allocation1 [shape = 'u32[144,128]{1,0:T(1,128)}', space=vmem, size = 0x12000, scoped, tag = 'internal scratch']
  %s0 = inlined_call_operand.vmem [shape: f32[128,8], index: 0, kind: input, shape index: {}]
  %s1 = inlined_call_operand.vmem [shape: f32[1,8], index: 1, kind: input, shape index: {}]
  %s2 = inlined_call_operand.vmem [shape: f32[1,8], index: 2, kind: input, shape index: {}]
  %s3 = inlined_call_operand.vmem [shape: f32[128,8], index: 3, kind: input, shape index: {}]
  %s4 = inlined_call_operand.vmem [shape: f32[1,8], index: 4, kind: input, shape index: {}]
  %s5 = inlined_call_operand.vmem [shape: f32[1,8], index: 5, kind: input, shape index: {}]
  %s6 = inlined_call_operand.vmem [shape: f32[128,8], index: 6, kind: output, shape index: {}]
  %s7 = sld [smem:[#allocation0]]
  $region34: #{resblock_forward.13} parent=0
    _
  %s9 = ssub.s32 1, %s7
  %s10 = scalar_select 0, %s9, %s7
  // Predicated region
  $region2: #{resblock_forward.13} parent=0 // pred_check
    _
  $region3: #{resblock_forward.13} parent=0 // pred_check_branch
    %12 = sbr.rel (0) target = $region5
  $region4: #{resblock_forward.13} parent=0 // pred_region
    _
  $region5: #{resblock_forward.13} parent=0 // pred_fallthru
    _
  // Predicated region
  $region6: #{resblock_forward.13} parent=0 // pred_check
    _
  $region7: #{resblock_forward.13} parent=0 // pred_check_branch
    %14 = sbr.rel (0) target = $region9
  $region8: #{resblock_forward.13} parent=0 // pred_region
    _
  $region9: #{resblock_forward.13} parent=0 // pred_fallthru
    _
  // Predicated region
  $region10: #{resblock_forward.13} parent=0 // pred_check
    _
  $region11: #{resblock_forward.13} parent=0 // pred_check_branch
    %16 = sbr.rel (0) target = $region13
  $region12: #{resblock_forward.13} parent=0 // pred_region
    _
  $region13: #{resblock_forward.13} parent=0 // pred_fallthru
    _
  // Predicated region
  $region14: #{resblock_forward.13} parent=0 // pred_check
    _
  $region15: #{resblock_forward.13} parent=0 // pred_check_branch
    %18 = sbr.rel (0) target = $region17
  $region16: #{resblock_forward.13} parent=0 // pred_region
    _
  $region17: #{resblock_forward.13} parent=0 // pred_fallthru
    _
  // Predicated region
  $region18: #{resblock_forward.13} parent=0 // pred_check
    _
  $region19: #{resblock_forward.13} parent=0 // pred_check_branch
    %20 = sbr.rel (0) target = $region21
  $region20: #{resblock_forward.13} parent=0 // pred_region
    _
  $region21: #{resblock_forward.13} parent=0 // pred_fallthru
    _
  // Predicated region
  $region22: #{resblock_forward.13} parent=0 // pred_check
    _
  $region23: #{resblock_forward.13} parent=0 // pred_check_branch
    %22 = sbr.rel (0) target = $region25
  $region24: #{resblock_forward.13} parent=0 // pred_region
    _
  $region25: #{resblock_forward.13} parent=0 // pred_fallthru
    _
  %v23 = vld [vmem:[%s0] sm:$0xff]
  %v24 = vld [vmem:[%s0 + $0x8] sm:$0xff]
  %v25 = vld [vmem:[%s0 + $0x10] sm:$0xff]
  %v26 = vld [vmem:[%s0 + $0x18] sm:$0xff]
  %v27 = vld [vmem:[%s0 + $0x20] sm:$0xff]
  %v28 = vld [vmem:[%s0 + $0x28] sm:$0xff]
  %v29 = vld [vmem:[%s0 + $0x30] sm:$0xff]
  %v30 = vld [vmem:[%s0 + $0x38] sm:$0xff]
  %v31 = vld [vmem:[%s0 + $0x40] sm:$0xff]
  %v32 = vld [vmem:[%s0 + $0x48] sm:$0xff]
  %v33 = vld [vmem:[%s0 + $0x50] sm:$0xff]
  %v34 = vld [vmem:[%s0 + $0x58] sm:$0xff]
  %v35 = vld [vmem:[%s0 + $0x60] sm:$0xff]
  %v36 = vld [vmem:[%s0 + $0x68] sm:$0xff]
  %v37 = vld [vmem:[%s0 + $0x70] sm:$0xff]
  %v38 = vld [vmem:[%s0 + $0x78] sm:$0xff]
  %v39 = vld [vmem:[%s1] sm:$0x1]
  %v41 = vlaneseq
  %v42 = vshrl.u32 %v41, 7
  %v43 = vsub.s32 0, %v42
  %v44 = vrot.slane %v39, %v43
  %v46 = vmul.f32 %v23, %v44
  %v47 = vmul.f32 %v24, %v44
  %v48 = vmul.f32 %v25, %v44
  %v49 = vmul.f32 %v26, %v44
  %v50 = vmul.f32 %v27, %v44
  %v51 = vmul.f32 %v28, %v44
  %v52 = vmul.f32 %v29, %v44
  %v53 = vmul.f32 %v30, %v44
  %v54 = vmul.f32 %v31, %v44
  %v55 = vmul.f32 %v32, %v44
  %v56 = vmul.f32 %v33, %v44
  %v57 = vmul.f32 %v34, %v44
  %v58 = vmul.f32 %v35, %v44
  %v59 = vmul.f32 %v36, %v44
  %v60 = vmul.f32 %v37, %v44
  %v61 = vmul.f32 %v38, %v44
  %v62 = vld [vmem:[%s2] sm:$0x1]
  %v64 = vlaneseq
  %v65 = vshrl.u32 %v64, 7
  %v66 = vsub.s32 0, %v65
  %v67 = vrot.slane %v62, %v66
  %v69 = vadd.f32 %v46, %v67
  %v70 = vadd.f32 %v47, %v67
  %v71 = vadd.f32 %v48, %v67
  %v72 = vadd.f32 %v49, %v67
  %v73 = vadd.f32 %v50, %v67
  %v74 = vadd.f32 %v51, %v67
  %v75 = vadd.f32 %v52, %v67
  %v76 = vadd.f32 %v53, %v67
  %v77 = vadd.f32 %v54, %v67
  %v78 = vadd.f32 %v55, %v67
  %v79 = vadd.f32 %v56, %v67
  %v80 = vadd.f32 %v57, %v67
  %v81 = vadd.f32 %v58, %v67
  %v82 = vadd.f32 %v59, %v67
  %v83 = vadd.f32 %v60, %v67
  %v84 = vadd.f32 %v61, %v67
  %v85 = vld [vmem:[%s3] sm:$0xff]
  %v86 = vld [vmem:[%s3 + $0x8] sm:$0xff]
  %v87 = vld [vmem:[%s3 + $0x10] sm:$0xff]
  %v88 = vld [vmem:[%s3 + $0x18] sm:$0xff]
  %v89 = vld [vmem:[%s3 + $0x20] sm:$0xff]
  %v90 = vld [vmem:[%s3 + $0x28] sm:$0xff]
  %v91 = vld [vmem:[%s3 + $0x30] sm:$0xff]
  %v92 = vld [vmem:[%s3 + $0x38] sm:$0xff]
  %v93 = vld [vmem:[%s3 + $0x40] sm:$0xff]
  %v94 = vld [vmem:[%s3 + $0x48] sm:$0xff]
  %v95 = vld [vmem:[%s3 + $0x50] sm:$0xff]
  %v96 = vld [vmem:[%s3 + $0x58] sm:$0xff]
  %v97 = vld [vmem:[%s3 + $0x60] sm:$0xff]
  %v98 = vld [vmem:[%s3 + $0x68] sm:$0xff]
  %v99 = vld [vmem:[%s3 + $0x70] sm:$0xff]
  %v100 = vld [vmem:[%s3 + $0x78] sm:$0xff]
  %v101 = vld [vmem:[%s4] sm:$0x1]
  %v103 = vlaneseq
  %v104 = vshrl.u32 %v103, 7
  %v105 = vsub.s32 0, %v104
  %v106 = vrot.slane %v101, %v105
  %v108 = vmul.f32 %v85, %v106
  %v109 = vmul.f32 %v86, %v106
  %v110 = vmul.f32 %v87, %v106
  %v111 = vmul.f32 %v88, %v106
  %v112 = vmul.f32 %v89, %v106
  %v113 = vmul.f32 %v90, %v106
  %v114 = vmul.f32 %v91, %v106
  %v115 = vmul.f32 %v92, %v106
  %v116 = vmul.f32 %v93, %v106
  %v117 = vmul.f32 %v94, %v106
  %v118 = vmul.f32 %v95, %v106
  %v119 = vmul.f32 %v96, %v106
  %v120 = vmul.f32 %v97, %v106
  %v121 = vmul.f32 %v98, %v106
  %v122 = vmul.f32 %v99, %v106
  %v123 = vmul.f32 %v100, %v106
  %v124 = vadd.f32 %v69, %v108
  %v125 = vadd.f32 %v70, %v109
  %v126 = vadd.f32 %v71, %v110
  %v127 = vadd.f32 %v72, %v111
  %v128 = vadd.f32 %v73, %v112
  %v129 = vadd.f32 %v74, %v113
  %v130 = vadd.f32 %v75, %v114
  %v131 = vadd.f32 %v76, %v115
  %v132 = vadd.f32 %v77, %v116
  %v133 = vadd.f32 %v78, %v117
  %v134 = vadd.f32 %v79, %v118
  %v135 = vadd.f32 %v80, %v119
  %v136 = vadd.f32 %v81, %v120
  %v137 = vadd.f32 %v82, %v121
  %v138 = vadd.f32 %v83, %v122
  %v139 = vadd.f32 %v84, %v123
  %v140 = vld [vmem:[%s5] sm:$0x1]
  %v142 = vlaneseq
  %v143 = vshrl.u32 %v142, 7
  %v144 = vsub.s32 0, %v143
  %v145 = vrot.slane %v140, %v144
  %v147 = vadd.f32 %v124, %v145
  %v148 = vadd.f32 %v125, %v145
  %v149 = vadd.f32 %v126, %v145
  %v150 = vadd.f32 %v127, %v145
  %v151 = vadd.f32 %v128, %v145
  %v152 = vadd.f32 %v129, %v145
  %v153 = vadd.f32 %v130, %v145
  %v154 = vadd.f32 %v131, %v145
  %v155 = vadd.f32 %v132, %v145
  %v156 = vadd.f32 %v133, %v145
  %v157 = vadd.f32 %v134, %v145
  %v158 = vadd.f32 %v135, %v145
  %v159 = vadd.f32 %v136, %v145
  %v160 = vadd.f32 %v137, %v145
  %v161 = vadd.f32 %v138, %v145
  %v162 = vadd.f32 %v139, %v145
  %vm163 = vcmp.gt.f32.partialorder %v147, 0.0
  %vm164 = vcmp.gt.f32.partialorder %v148, 0.0
  %vm165 = vcmp.gt.f32.partialorder %v149, 0.0
  %vm166 = vcmp.gt.f32.partialorder %v150, 0.0
  %vm167 = vcmp.gt.f32.partialorder %v151, 0.0
  %vm168 = vcmp.gt.f32.partialorder %v152, 0.0
  %vm169 = vcmp.gt.f32.partialorder %v153, 0.0
  %vm170 = vcmp.gt.f32.partialorder %v154, 0.0
  %vm171 = vcmp.gt.f32.partialorder %v155, 0.0
  %vm172 = vcmp.gt.f32.partialorder %v156, 0.0
  %vm173 = vcmp.gt.f32.partialorder %v157, 0.0
  %vm174 = vcmp.gt.f32.partialorder %v158, 0.0
  %vm175 = vcmp.gt.f32.partialorder %v159, 0.0
  %vm176 = vcmp.gt.f32.partialorder %v160, 0.0
  %vm177 = vcmp.gt.f32.partialorder %v161, 0.0
  %vm178 = vcmp.gt.f32.partialorder %v162, 0.0
  %v179 = vmul.f32 %v147, 0.2
  %v180 = vmul.f32 %v148, 0.2
  %v181 = vmul.f32 %v149, 0.2
  %v182 = vmul.f32 %v150, 0.2
  %v183 = vmul.f32 %v151, 0.2
  %v184 = vmul.f32 %v152, 0.2
  %v185 = vmul.f32 %v153, 0.2
  %v186 = vmul.f32 %v154, 0.2
  %v187 = vmul.f32 %v155, 0.2
  %v188 = vmul.f32 %v156, 0.2
  %v189 = vmul.f32 %v157, 0.2
  %v190 = vmul.f32 %v158, 0.2
  %v191 = vmul.f32 %v159, 0.2
  %v192 = vmul.f32 %v160, 0.2
  %v193 = vmul.f32 %v161, 0.2
  %v194 = vmul.f32 %v162, 0.2
  %v195 = vsel %vm163, %v147, %v179
  %v196 = vsel %vm164, %v148, %v180
  %v197 = vsel %vm165, %v149, %v181
  %v198 = vsel %vm166, %v150, %v182
  %v199 = vsel %vm167, %v151, %v183
  %v200 = vsel %vm168, %v152, %v184
  %v201 = vsel %vm169, %v153, %v185
  %v202 = vsel %vm170, %v154, %v186
  %v203 = vsel %vm171, %v155, %v187
  %v204 = vsel %vm172, %v156, %v188
  %v205 = vsel %vm173, %v157, %v189
  %v206 = vsel %vm174, %v158, %v190
  %v207 = vsel %vm175, %v159, %v191
  %v208 = vsel %vm176, %v160, %v192
  %v209 = vsel %vm177, %v161, %v193
  %v210 = vsel %vm178, %v162, %v194
  %vm211 = vcmask 64512
  %212 = vst.msk [vmem:[%s6] sm:$0xff] %vm211, %v195
  %213 = vst.msk [vmem:[%s6 + $0x8] sm:$0xff] %vm211, %v196
  %214 = vst.msk [vmem:[%s6 + $0x10] sm:$0xff] %vm211, %v197
  %215 = vst.msk [vmem:[%s6 + $0x18] sm:$0xff] %vm211, %v198
  %216 = vst.msk [vmem:[%s6 + $0x20] sm:$0xff] %vm211, %v199
  %217 = vst.msk [vmem:[%s6 + $0x28] sm:$0xff] %vm211, %v200
  %218 = vst.msk [vmem:[%s6 + $0x30] sm:$0xff] %vm211, %v201
  %219 = vst.msk [vmem:[%s6 + $0x38] sm:$0xff] %vm211, %v202
  %220 = vst.msk [vmem:[%s6 + $0x40] sm:$0xff] %vm211, %v203
  %221 = vst.msk [vmem:[%s6 + $0x48] sm:$0xff] %vm211, %v204
  %222 = vst.msk [vmem:[%s6 + $0x50] sm:$0xff] %vm211, %v205
  %223 = vst.msk [vmem:[%s6 + $0x58] sm:$0xff] %vm211, %v206
  %224 = vst.msk [vmem:[%s6 + $0x60] sm:$0xff] %vm211, %v207
  %225 = vst.msk [vmem:[%s6 + $0x68] sm:$0xff] %vm211, %v208
  %226 = vst.msk [vmem:[%s6 + $0x70] sm:$0xff] %vm211, %v209
  %227 = vst.msk [vmem:[%s6 + $0x78] sm:$0xff] %vm211, %v210
  // Predicated region
  $region26: #{resblock_forward.13} parent=0 // pred_check
    _
  $region27: #{resblock_forward.13} parent=0 // pred_check_branch
    %229 = sbr.rel (0) target = $region29
  $region28: #{resblock_forward.13} parent=0 // pred_region
    _
  $region29: #{resblock_forward.13} parent=0 // pred_fallthru
    _
  // Predicated region
  $region30: #{resblock_forward.13} parent=0 // pred_check
    _
  $region31: #{resblock_forward.13} parent=0 // pred_check_branch
    %231 = sbr.rel (0) target = $region33
  $region32: #{resblock_forward.13} parent=0 // pred_region
    _
  $region33: #{resblock_forward.13} parent=0 // pred_fallthru
    _

// kernel: resblock_forward.10
$region0: #{resblock_forward.10}
  #allocation0 [shape = 'u32[]', space=smem, size = 0x4, offset = 0x4, fixed_abs, tag = 'smem constant byte address 0x4 - core index']
  #allocation1 [shape = 'u32[144,128]{1,0:T(1,128)}', space=vmem, size = 0x12000, scoped, tag = 'internal scratch']
  %s0 = inlined_call_operand.vmem [shape: bf16[2,64,72], index: 0, kind: input, shape index: {}]
  %s1 = inlined_call_operand.vmem [shape: bf16[72,8], index: 1, kind: input, shape index: {}]
  %s2 = inlined_call_operand.vmem [shape: f32[1,8], index: 2, kind: input, shape index: {}]
  %s3 = inlined_call_operand.vmem [shape: f32[2,64,8], index: 3, kind: output, shape index: {}]
  %s4 = sld [smem:[#allocation0]]
  $region45: #{resblock_forward.10} parent=0
    _
  %s6 = ssub.s32 1, %s4
  %s7 = scalar_select 0, %s6, %s4
  loop: start=0, step=1, limit=4
  $region2: #{resblock_forward.10} parent=0 // loop_pre_header
    _
  $region3: #{resblock_forward.10} parent=0 // loop_header
    %s9 = sphi 0, %s13
    %p10 = scmp.ge.s32.totalorder %s9, 4
    %s16 = sphi 0, %s28
    %s17 = sphi 0, %s24
    %s18 = sphi 0, %s16
    %s19 = sphi 0, %s17
    %s20 = sphi 0, %s18
    %s21 = sphi 0, %s19
    %s33 = sphi 0, %s35
    %s36 = sphi 0, %s33
    %s37 = sphi 0, %s36
    %s53 = sphi 0, %s37
    %s57 = sphi 0, %s57
    %s59 = sphi 0, %s57
    %s60 = sphi 0, %s59
    %s74 = sphi 0, %s60
    %s78 = sphi 0, %s78
    %s80 = sphi 0, %s78
    %s81 = sphi 0, %s80
    %s95 = sphi 0, %s81
    %s103 = sphi 0, %s105
    %s106 = sphi 0, %s103
    %s107 = sphi 0, %s106
    %s123 = sphi 0, %s107
  $region4: #{resblock_forward.10} parent=0 // loop_header_branch
    %12 = sbr.rel (%p10) target = $region8
  $region5: #{resblock_forward.10} parent=0 // loop_body
    %s14 = ssub.s32 %s9, 1
    %s15 = ssub.s32 %s9, 2
    %s22 = sadd.s32 1, %s17
    %p23 = scmp.ge.s32.totalorder %s22, 1
    %s24 = scalar_select %p23, 0, %s22
    %s25 = sadd.s32 1, %s16
    %s26 = scalar_select %p23, %s25, %s16
    %p27 = scmp.ge.s32.totalorder %s26, 2
    %s28 = scalar_select %p27, 0, %s26
    %s29 = ssub.s32 %s16, %s28
    %s30 = ssub.s32 %s17, %s24
    %s31 = sor.u32 %s29, %s30
    %p32 = scmp.eq.s32.totalorder %s31, 0
    %s34 = sadd.s32 %s33, 1
    %s35 = scalar_select %p32, %s33, %s34
    %p38 = pneg %p32
    %p39 = scmp.eq.s32.totalorder %s9, 1
    %p40 = por %p38, %p39
    %p41 = scmp.ne.s32.totalorder %s33, %s36
    %p42 = scmp.eq.s32.totalorder %s9, 0
    %p43 = por %p41, %p42
    %p44 = scmp.ne.s32.totalorder %s33, %s36
    %p45 = scmp.eq.s32.totalorder %s14, 1
    %p46 = por %p44, %p45
    %p47 = scmp.ne.s32.totalorder %s36, %s37
    %p48 = scmp.eq.s32.totalorder %s14, 0
    %p49 = por %p47, %p48
    %p50 = scmp.ne.s32.totalorder %s36, %s37
    %p51 = scmp.eq.s32.totalorder %s15, 1
    %p52 = por %p50, %p51
    %p54 = scmp.ne.s32.totalorder %s37, %s53
    %p55 = scmp.eq.s32.totalorder %s15, 0
    %p56 = por %p54, %p55
    %s58 = sadd.s32 %s57, 1
    %p61 = scmp.eq.s32.totalorder %s9, 1
    %p62 = scmp.ne.s32.totalorder %s57, %s59
    %p63 = scmp.eq.s32.totalorder %s9, 0
    %p64 = por %p62, %p63
    %p65 = scmp.ne.s32.totalorder %s57, %s59
    %p66 = scmp.eq.s32.totalorder %s14, 1
    %p67 = por %p65, %p66
    %p68 = scmp.ne.s32.totalorder %s59, %s60
    %p69 = scmp.eq.s32.totalorder %s14, 0
    %p70 = por %p68, %p69
    %p71 = scmp.ne.s32.totalorder %s59, %s60
    %p72 = scmp.eq.s32.totalorder %s15, 1
    %p73 = por %p71, %p72
    %p75 = scmp.ne.s32.totalorder %s60, %s74
    %p76 = scmp.eq.s32.totalorder %s15, 0
    %p77 = por %p75, %p76
    %s79 = sadd.s32 %s78, 1
    %p82 = scmp.eq.s32.totalorder %s9, 1
    %p83 = scmp.ne.s32.totalorder %s78, %s80
    %p84 = scmp.eq.s32.totalorder %s9, 0
    %p85 = por %p83, %p84
    %p86 = scmp.ne.s32.totalorder %s78, %s80
    %p87 = scmp.eq.s32.totalorder %s14, 1
    %p88 = por %p86, %p87
    %p89 = scmp.ne.s32.totalorder %s80, %s81
    %p90 = scmp.eq.s32.totalorder %s14, 0
    %p91 = por %p89, %p90
    %p92 = scmp.ne.s32.totalorder %s80, %s81
    %p93 = scmp.eq.s32.totalorder %s15, 1
    %p94 = por %p92, %p93
    %p96 = scmp.ne.s32.totalorder %s81, %s95
    %p97 = scmp.eq.s32.totalorder %s15, 0
    %p98 = por %p96, %p97
    %s99 = ssub.s32 %s16, %s28
    %s100 = ssub.s32 %s17, %s24
    %s101 = sor.u32 %s99, %s100
    %p102 = scmp.eq.s32.totalorder %s101, 0
    %s104 = sadd.s32 %s103, 1
    %s105 = scalar_select %p102, %s103, %s104
    %p108 = pneg %p102
    %p109 = scmp.eq.s32.totalorder %s9, 1
    %p110 = por %p108, %p109
    %p111 = scmp.ne.s32.totalorder %s103, %s106
    %p112 = scmp.eq.s32.totalorder %s9, 0
    %p113 = por %p111, %p112
    %p114 = scmp.ne.s32.totalorder %s103, %s106
    %p115 = scmp.eq.s32.totalorder %s14, 1
    %p116 = por %p114, %p115
    %p117 = scmp.ne.s32.totalorder %s106, %s107
    %p118 = scmp.eq.s32.totalorder %s14, 0
    %p119 = por %p117, %p118
    %p120 = scmp.ne.s32.totalorder %s106, %s107
    %p121 = scmp.eq.s32.totalorder %s15, 1
    %p122 = por %p120, %p121
    %p124 = scmp.ne.s32.totalorder %s107, %s123
    %p125 = scmp.eq.s32.totalorder %s15, 0
    %p126 = por %p124, %p125
    %p127 = scmp.le.s32.totalorder 1, %s9
    %p128 = scmp.lt.s32.totalorder %s9, 3
    %p129 = pnand %p127, %p128
    %p130 = pneg %p129
    // Predicated region
    $region9: #{resblock_forward.10} parent=5 // pred_check
      _
    $region10: #{resblock_forward.10} parent=5 // pred_check_branch
      %132 = sbr.rel (%p129) target = $region12
    $region11: #{resblock_forward.10} parent=5 // pred_region
      %s133 = ssub.s32 %s9, 1
      // Predicated region
      $region13: #{resblock_forward.10} parent=11 // pred_check
        %p134 = pneg %p70
      $region14: #{resblock_forward.10} parent=11 // pred_check_branch
        %136 = sbr.rel (%p134) target = $region16
      $region15: #{resblock_forward.10} parent=11 // pred_region
        _
      $region16: #{resblock_forward.10} parent=11 // pred_fallthru
        _
      // Predicated region
      $region17: #{resblock_forward.10} parent=11 // pred_check
        %p137 = pneg %p91
      $region18: #{resblock_forward.10} parent=11 // pred_check_branch
        %139 = sbr.rel (%p137) target = $region20
      $region19: #{resblock_forward.10} parent=11 // pred_region
        _
      $region20: #{resblock_forward.10} parent=11 // pred_fallthru
        _
    $region12: #{resblock_forward.10} parent=5 // pred_fallthru
      _
    %p140 = scmp.lt.s32.totalorder %s9, 2
    // Predicated region
    $region21: #{resblock_forward.10} parent=5 // pred_check
      %p141 = pneg %p140
    $region22: #{resblock_forward.10} parent=5 // pred_check_branch
      %143 = sbr.rel (%p141) target = $region24
    $region23: #{resblock_forward.10} parent=5 // pred_region
      // Predicated region
      $region25: #{resblock_forward.10} parent=23 // pred_check
        %p144 = pneg %p43
      $region26: #{resblock_forward.10} parent=23 // pred_check_branch
        %146 = sbr.rel (%p144) target = $region28
      $region27: #{resblock_forward.10} parent=23 // pred_region
        %s147 = smul.u32 8, %s17
        %p148 = scmp.lt.s32.totalorder %s16, 1
        %s149 = scalar_select %p148, %s16, 1
        %p150 = scmp.lt.s32.totalorder %s147, 7
        %s151 = scalar_select %p150, %s147, 7
        %s152 = smul.addr %s149, 8
        %s153 = sadd.s32 %s151, %s152
        %s154 = smul.addr %s153, 4
        %s155 = scalar_lea.vmem %s0, %s154
        %s156 = smul.u32 8, %s17
      $region28: #{resblock_forward.10} parent=23 // pred_fallthru
        _
    $region24: #{resblock_forward.10} parent=5 // pred_fallthru
      _
    %p157 = scmp.le.s32.totalorder 1, %s9
    %p158 = scmp.lt.s32.totalorder %s9, 3
    %p159 = pnand %p157, %p158
    %p160 = pneg %p159
    // Predicated region
    $region29: #{resblock_forward.10} parent=5 // pred_check
      _
    $region30: #{resblock_forward.10} parent=5 // pred_check_branch
      %162 = sbr.rel (%p159) target = $region32
    $region31: #{resblock_forward.10} parent=5 // pred_region
      %s163 = ssub.s32 %s9, 1
      %s164 = smul.u32 8, %s19
      %p165 = scmp.lt.s32.totalorder %s18, 1
      %s166 = scalar_select %p165, %s18, 1
      %p167 = scmp.lt.s32.totalorder %s164, 7
      %s168 = scalar_select %p167, %s164, 7
      %s169 = smul.addr %s166, 8
      %s170 = sadd.s32 %s168, %s169
      %s171 = smul.addr %s170, 4
      %s172 = scalar_lea.vmem %s0, %s171
      %p173 = pneg %p49
      %p174 = pneg %p46
      %p175 = pneg %p70
      %p176 = pneg %p67
      %p177 = pneg %p91
      %p178 = pneg %p88
      %p179 = pneg %p119
      %p180 = pneg %p116
      %s181 = smul.u32 8, %s19
      %p182 = scmp.lt.s32.totalorder %s18, 1
      %s183 = scalar_select %p182, %s18, 1
      %p184 = scmp.lt.s32.totalorder %s181, 7
      %s185 = scalar_select %p184, %s181, 7
      %s186 = smul.addr %s183, 8
      %s187 = sadd.s32 %s185, %s186
      %s188 = smul.addr %s187, 8
      %s189 = scalar_lea.vmem %s3, %s188
      %s190 = smul.u32 8, %s19
      %p191 = scmp.lt.s32.totalorder %s18, 1
      %s192 = scalar_select %p191, %s18, 1
      %p193 = scmp.lt.s32.totalorder %s190, 7
      %s194 = scalar_select %p193, %s190, 7
      %s195 = smul.addr %s192, 8
      %s196 = sadd.s32 %s194, %s195
      %s197 = smul.addr %s196, 4
      %s198 = scalar_lea.vmem %s0, %s197
      %s199 = smul.u32 8, %s19
      %s200 = smul.u32 8, %s19
      %p201 = scmp.lt.s32.totalorder %s18, 1
      %s202 = scalar_select %p201, %s18, 1
      %p203 = scmp.lt.s32.totalorder %s200, 7
      %s204 = scalar_select %p203, %s200, 7
      %s205 = smul.addr %s202, 8
      %s206 = sadd.s32 %s204, %s205
      %s207 = smul.addr %s206, 8
      %s208 = scalar_lea.vmem %s3, %s207
      %s209 = smul.u32 8, %s19
      %v211 = vld [vmem:[%s198] sm:$0xf]
      %v212 = vld [vmem:[%s198 + $0x4] sm:$0xf]
      %v213 = vld [vmem:[%s198 + $0x8] sm:$0xf]
      %v214 = vld [vmem:[%s198 + $0xc] sm:$0xf]
      %v215 = vld [vmem:[%s198 + $0x10] sm:$0xf]
      %v216 = vld [vmem:[%s198 + $0x14] sm:$0xf]
      %v217 = vld [vmem:[%s198 + $0x18] sm:$0xf]
      %v218 = vld [vmem:[%s198 + $0x1c] sm:$0xf]
      %v219 = vld [vmem:[%s1] sm:$0xf]
      %v220 = vld [vmem:[%s1 + $0x4] sm:$0xf]
      %v221 = vld [vmem:[%s1 + $0x8] sm:$0xf]
      %v222 = vld [vmem:[%s1 + $0xc] sm:$0xf]
      %v223 = vld [vmem:[%s1 + $0x10] sm:$0xf]
      %v224 = vld [vmem:[%s1 + $0x14] sm:$0xf]
      %v225 = vld [vmem:[%s1 + $0x18] sm:$0xf]
      %v226 = vld [vmem:[%s1 + $0x1c] sm:$0xf]
      %v227 = vld [vmem:[%s1 + $0x20] sm:$0xf]
      %v228 = vld [vmem:[%s2] sm:$0x1]
      %v230 = vlaneseq
      %v231 = vshrl.u32 %v230, 7
      %v232 = vsub.s32 0, %v231
      %v233 = vrot.slane %v228, %v232
      %v243 = vunpack.c.l.b16 %v211
      %v244 = vunpack.c.l.b16 %v212
      %v245 = vunpack.c.l.b16 %v213
      %v246 = vunpack.c.l.b16 %v214
      %v247 = vunpack.c.l.b16 %v215
      %v248 = vunpack.c.l.b16 %v216
      %v249 = vunpack.c.l.b16 %v217
      %v250 = vunpack.c.l.b16 %v218
      %v251 = vpack.c.b16 %v244, %v243
      %v252 = vpack.c.b16 %v246, %v245
      %v253 = vpack.c.b16 %v248, %v247
      %v254 = vpack.c.b16 %v250, %v249
      %v264 = vunpack.c.l.b16 %v219
      %v265 = vunpack.c.l.b16 %v220
      %v266 = vunpack.c.l.b16 %v221
      %v267 = vunpack.c.l.b16 %v222
      %v268 = vunpack.c.l.b16 %v223
      %v269 = vunpack.c.l.b16 %v224
      %v270 = vunpack.c.l.b16 %v225
      %v271 = vunpack.c.l.b16 %v226
      %v272 = vunpack.c.l.b16 %v227
      %v273 = vpack.c.b16 %v265, %v264
      %v274 = vpack.c.b16 %v267, %v266
      %v275 = vpack.c.b16 %v269, %v268
      %v276 = vpack.c.b16 %v271, %v270
      %v277 = vpack.c.b16 %v272, %v272
      %vm282 = vcmask 588800
      %v284 = vsel %vm282, %v251, 0
      %v287 = vsel %vm282, %v252, 0
      %v290 = vsel %vm282, %v253, 0
      %v293 = vsel %vm282, %v254, 0
      %vm295 = vcmask 1043456
      %v297 = vsel %vm295, %v277, 0
      %299 = vmatprep.subr.bf16.mxu0 0
      %300 = vmatpush1.bf16.msra.mxu0 %v273
      %301 = vmatprep.subr.bf16.mxu0 0
      %302 = vmatpush1.bf16.msra.mxu0 %v274
      %303 = vmatprep.subr.bf16.mxu0 0
      %304 = vmatpush1.bf16.msra.mxu0 %v275
      %305 = vmatprep.subr.bf16.mxu0 0
      %306 = vmatpush1.bf16.msra.mxu0 %v276
      %307 = vmatprep.subr.bf16.mxu0 0
      %308 = vmatpush1.bf16.msra.mxu0 %v297
      %309 = vmatprep.subr.bf16.mxu0 0
      %310 = vmatpush1.bf16.msra.mxu0 0
      %311 = vmatprep.subr.bf16.mxu0 0
      %312 = vmatpush1.bf16.msra.mxu0 0
      %313 = vmatprep.subr.bf16.mxu0 0
      %314 = vmatpush1.bf16.msra.mxu0 0
      %315 = vmatprep.subr.bf16.mxu0 0
      %316 = vmatpush1.bf16.msra.mxu0 0
      %317 = vmatprep.subr.bf16.mxu0 0
      %318 = vmatpush1.bf16.msra.mxu0 0
      %319 = vmatprep.subr.bf16.mxu0 0
      %320 = vmatpush1.bf16.msra.mxu0 0
      %321 = vmatprep.subr.bf16.mxu0 0
      %322 = vmatpush1.bf16.msra.mxu0 0
      %323 = vmatprep.subr.bf16.mxu0 0
      %324 = vmatpush1.bf16.msra.mxu0 0
      %325 = vmatprep.subr.bf16.mxu0 0
      %326 = vmatpush1.bf16.msra.mxu0 0
      %327 = vmatprep.subr.bf16.mxu0 0
      %328 = vmatpush1.bf16.msra.mxu0 0
      %329 = vmatprep.subr.bf16.mxu0 0
      %330 = vmatpush1.bf16.msra.mxu0 0
      %331 = vmatprep.mubr.bf16.mxu0 0
      %332 = vmatmul.mubr.bf16.gmra.mrb[0].mxu0 %v284
      %v333 = vpop.f32.mrb[0].mxu0
      %v334 = vadd.f32 %v233, %v333
      %v335 = vpop.f32.mrb[0].mxu0
      %v336 = vpop.f32.mrb[0].mxu0
      %v337 = vadd.f32 %v233, %v336
      %v338 = vpop.f32.mrb[0].mxu0
      %339 = vmatprep.mubr.bf16.mxu0 0
      %340 = vmatmul.mubr.bf16.gmra.mrb[0].mxu0 %v287
      %v341 = vpop.f32.mrb[0].mxu0
      %v342 = vadd.f32 %v233, %v341
      %v343 = vpop.f32.mrb[0].mxu0
      %v344 = vpop.f32.mrb[0].mxu0
      %v345 = vadd.f32 %v233, %v344
      %v346 = vpop.f32.mrb[0].mxu0
      %347 = vmatprep.mubr.bf16.mxu0 0
      %348 = vmatmul.mubr.bf16.gmra.mrb[0].mxu0 %v290
      %v349 = vpop.f32.mrb[0].mxu0
      %v350 = vadd.f32 %v233, %v349
      %v351 = vpop.f32.mrb[0].mxu0
      %v352 = vpop.f32.mrb[0].mxu0
      %v353 = vadd.f32 %v233, %v352
      %v354 = vpop.f32.mrb[0].mxu0
      %355 = vmatprep.mubr.bf16.mxu0 0
      %356 = vmatmul.mubr.bf16.gmra.mrb[0].mxu0 %v293
      %v357 = vpop.f32.mrb[0].mxu0
      %v358 = vadd.f32 %v233, %v357
      %v359 = vpop.f32.mrb[0].mxu0
      %v360 = vpop.f32.mrb[0].mxu0
      %v361 = vadd.f32 %v233, %v360
      %v362 = vpop.f32.mrb[0].mxu0
      %363 = vdwg.mxu0
      %vm364 = vcmask 64512
      %365 = vst.msk [vmem:[%s208] sm:$0xff] %vm364, %v334
      %366 = vst.msk [vmem:[%s208 + $0x8] sm:$0xff] %vm364, %v337
      %367 = vst.msk [vmem:[%s208 + $0x10] sm:$0xff] %vm364, %v342
      %368 = vst.msk [vmem:[%s208 + $0x18] sm:$0xff] %vm364, %v345
      %369 = vst.msk [vmem:[%s208 + $0x20] sm:$0xff] %vm364, %v350
      %370 = vst.msk [vmem:[%s208 + $0x28] sm:$0xff] %vm364, %v353
      %371 = vst.msk [vmem:[%s208 + $0x30] sm:$0xff] %vm364, %v358
      %372 = vst.msk [vmem:[%s208 + $0x38] sm:$0xff] %vm364, %v361
      %s373 = smul.u32 8, %s19
      %p374 = scmp.lt.s32.totalorder %s18, 1
      %s375 = scalar_select %p374, %s18, 1
      %p376 = scmp.lt.s32.totalorder %s373, 7
      %s377 = scalar_select %p376, %s373, 7
      %s378 = smul.addr %s375, 8
      %s379 = sadd.s32 %s377, %s378
      %s380 = smul.addr %s379, 8
      %s381 = scalar_lea.vmem %s3, %s380
      // Predicated region
      $region33: #{resblock_forward.10} parent=31 // pred_check
        %p382 = pneg %p116
      $region34: #{resblock_forward.10} parent=31 // pred_check_branch
        %384 = sbr.rel (%p382) target = $region36
      $region35: #{resblock_forward.10} parent=31 // pred_region
        %s385 = smul.u32 8, %s19
      $region36: #{resblock_forward.10} parent=31 // pred_fallthru
        _
    $region32: #{resblock_forward.10} parent=5 // pred_fallthru
      _
    %p386 = scmp.le.s32.totalorder 2, %s9
    // Predicated region
    $region37: #{resblock_forward.10} parent=5 // pred_check
      %p387 = pneg %p386
    $region38: #{resblock_forward.10} parent=5 // pred_check_branch
      %389 = sbr.rel (%p387) target = $region40
    $region39: #{resblock_forward.10} parent=5 // pred_region
      %s390 = ssub.s32 %s9, 2
      // Predicated region
      $region41: #{resblock_forward.10} parent=39 // pred_check
        %p391 = pneg %p122
      $region42: #{resblock_forward.10} parent=39 // pred_check_branch
        %393 = sbr.rel (%p391) target = $region44
      $region43: #{resblock_forward.10} parent=39 // pred_region
        %s394 = smul.u32 8, %s21
        %p395 = scmp.lt.s32.totalorder %s20, 1
        %s396 = scalar_select %p395, %s20, 1
        %p397 = scmp.lt.s32.totalorder %s394, 7
        %s398 = scalar_select %p397, %s394, 7
        %s399 = smul.addr %s396, 8
        %s400 = sadd.s32 %s398, %s399
        %s401 = smul.addr %s400, 8
        %s402 = scalar_lea.vmem %s3, %s401
      $region44: #{resblock_forward.10} parent=39 // pred_fallthru
        _
    $region40: #{resblock_forward.10} parent=5 // pred_fallthru
      _
  $region6: #{resblock_forward.10} parent=0 // loop_footer
    %s13 = sadd.s32 1, %s9
  $region7: #{resblock_forward.10} parent=0 // loop_footer_branch
    %8 = sbr.rel target = $region3
  $region8: #{resblock_forward.10} parent=0 // loop_exit
    _

</llo_original>
